<compile_context>
chip_gen: v6e
topology: v6e:2x2x1
jax: 0.10.0
libtpu: 0.0.40
codegen_flags: <defaults>
</compile_context>

<pallas_src>
import functools

import jax
import jax.numpy as jnp
from jax.experimental import pallas as pl
from jax.experimental.pallas import tpu as pltpu


# --------------------------------------------------------------------------- #
# Kernel
# --------------------------------------------------------------------------- #
def gate_kernel(x1_ref, x2_ref, wp_ref, bp_ref, wz1_ref, wz2_ref, bz_ref, o_ref):
    x1 = x1_ref[...]                                           # (TB, D1)
    x2 = x2_ref[...]                                           # (TB, D2)

    # proj: x2 -> x1_dim, f32 accumulation on the MXU.
    x2p = (jnp.dot(x2, wp_ref[...], preferred_element_type=jnp.float32)
           + bp_ref[...].astype(jnp.float32))                  # (TB, D1) f32

    # wz(cat([x1, x2p])) without materializing the concat.
    z = (jnp.dot(x1, wz1_ref[...], preferred_element_type=jnp.float32)
         + jnp.dot(x2p.astype(wz2_ref.dtype), wz2_ref[...],
                   preferred_element_type=jnp.float32)
         + bz_ref[...].astype(jnp.float32))                    # (TB, D1) f32

    gate_lambda = jax.nn.sigmoid(z)                            # EUP, f32
    out = x1.astype(jnp.float32) + gate_lambda * x2p
    o_ref[...] = out.astype(o_ref.dtype)


# --------------------------------------------------------------------------- #
# Param prep (one-time, load-time)
# --------------------------------------------------------------------------- #
def prepare_gate_params(w_proj, b_proj, w_z, b_z, dtype=None):
    """Transpose to (in, out) layout, split Wz into the x1 / x2p halves.

    w_proj: (D1, D2), b_proj: (D1,)   -- PyTorch nn.Linear layout (out, in)
    w_z:    (D1, 2*D1), b_z: (D1,)
    """
    D1 = w_proj.shape[0]
    wp_t = w_proj.T                        # (D2, D1)
    wz1_t = w_z[:, :D1].T                  # (D1, D1) acts on x1
    wz2_t = w_z[:, D1:].T                  # (D1, D1) acts on x2p
    bp = b_proj.reshape(1, D1)
    bz = b_z.reshape(1, D1)
    params = (wp_t, bp, wz1_t, wz2_t, bz)
    if dtype is not None:
        params = tuple(p.astype(dtype) for p in params)
    return params


# --------------------------------------------------------------------------- #
# Sizing helpers (all trace-time Python arithmetic)
# --------------------------------------------------------------------------- #
def _vmem_estimate_bytes(tb, d1, d2, act_bytes, w_bytes):
    # Streamed activations (x1, x2, out) are double-buffered by Pallas;
    # resident weights/biases are single-buffered (pl.Buffered(1)).
    weights = (d2 * d1 + 2 * d1 * d1 + 2 * d1) * w_bytes
    acts = 2 * tb * (d1 + d2 + d1) * act_bytes
    return weights + acts


def _vmem_capacity_bytes():
    try:
        return int(pltpu.get_tpu_info().vmem_capacity_bytes)
    except Exception:
        return 64 << 20   # v7x per-TC VMEM: a safe lower bound on every gen


def _pick_batch_tile(B, block_batch, d1, d2, act_bytes, w_bytes, budget):
    if B <= block_batch:
        return B                      # single full-batch block (always legal)
    tb = block_batch                  # multiple of 8 by construction
    # VMEM-aware: shrink until double-buffered activations + weights fit.
    while tb > 16 and _vmem_estimate_bytes(tb, d1, d2, act_bytes, w_bytes) > budget:
        tb //= 2
    # v7x megacore: prefer an even tile count with >= 2 steps per core so the
    # 'parallel' axis splits evenly and double-buffering has work to overlap.
    n = pl.cdiv(B, tb)
    while n > 1 and (n % 2 or n < 4) and tb >= 256 and tb % 16 == 0:
        tb //= 2
        n = pl.cdiv(B, tb)
    return tb


_RESIDENT_MAP = lambda i: (0, 0)      # constant block index: DMA'd once


def _resident_spec(shape):
    """Weights/biases: VMEM-resident, single-buffered."""
    try:
        return pl.BlockSpec(shape, _RESIDENT_MAP, pipeline_mode=pl.Buffered(1))
    except TypeError:                 # older jax without pipeline_mode kwarg
        return pl.BlockSpec(shape, _RESIDENT_MAP)


# --------------------------------------------------------------------------- #
# Forward
# --------------------------------------------------------------------------- #
@functools.partial(jax.jit, static_argnames=("block_batch",))
def gate_forward(x1, x2, params, *, block_batch=512):
    """x1: (B, D1), x2: (B, D2); params from prepare_gate_params()."""
    wp_t, bp, wz1_t, wz2_t, bz = params
    B, D1 = x1.shape
    D2 = x2.shape[1]
    act_bytes = x1.dtype.itemsize
    w_bytes = wp_t.dtype.itemsize

    vmem_cap = _vmem_capacity_bytes()
    tb = _pick_batch_tile(B, block_batch, D1, D2, act_bytes, w_bytes,
                          (vmem_cap * 3) // 4)
    n_tiles = pl.cdiv(B, tb)          # ragged last block is masked by Pallas

    # Generation-aware scoped-VMEM limit: always set explicitly, never above
    # ~7/8 of physical VMEM (v7x has only 64 MiB per TensorCore).
    est = _vmem_estimate_bytes(tb, D1, D2, act_bytes, w_bytes)
    vmem_limit = int(min(max((est * 3) // 2, 32 << 20), (vmem_cap * 7) // 8))

    cost = pl.CostEstimate(
        flops=2 * B * (D2 * D1 + 2 * D1 * D1) + 4 * B * D1,
        transcendentals=B * D1,
        bytes_accessed=(B * (D1 + D2) * act_bytes            # x1, x2 read
                        + B * D1 * act_bytes                  # out write
                        + (D2 * D1 + 2 * D1 * D1 + 2 * D1) * w_bytes),
    )

    stream = lambda i: (i, 0)         # streamed / double-buffered batch tiles

    out = pl.pallas_call(
        gate_kernel,
        out_shape=jax.ShapeDtypeStruct((B, D1), x1.dtype),
        grid_spec=pltpu.PrefetchScalarGridSpec(
            num_scalar_prefetch=0,
            grid=(n_tiles,),
            in_specs=[
                pl.BlockSpec((tb, D1), stream),   # x1
                pl.BlockSpec((tb, D2), stream),   # x2
                _resident_spec((D2, D1)),         # wp_t
                _resident_spec((1, D1)),          # bp
                _resident_spec((D1, D1)),         # wz1_t
                _resident_spec((D1, D1)),         # wz2_t
                _resident_spec((1, D1)),          # bz
            ],
            out_specs=pl.BlockSpec((tb, D1), stream),
        ),
        compiler_params=pltpu.CompilerParams(
            dimension_semantics=("parallel",),
            vmem_limit_bytes=vmem_limit,
        ),
        cost_estimate=cost,
    )(x1, x2, wp_t, bp, wz1_t, wz2_t, bz)
    return out


def gate_reference(x1, x2, w_proj, b_proj, w_z, b_z):
    """Pure-JAX reference mirroring the PyTorch forward exactly."""
    x2p = x2 @ w_proj.T + b_proj
    z = jnp.concatenate([x1, x2p], axis=1) @ w_z.T + b_z
    return x1 + jax.nn.sigmoid(z) * x2p


# TODO(synk): for very large D1/D2 (weights no longer VMEM-resident, which on
# v7x's 64 MiB happens at roughly half the dims of v5e/v6e), add a K/N-tiled
# weight path: extra "arbitrary" grid axes, f32 accumulator scratch, pl.when
# init/finalize.  Not needed at these dims.


if __name__ == "__main__":
    # Small, TPU-tile-friendly shapes.  B is deliberately NOT a multiple of
    # the batch tile so the ragged-last-block (masked store) path is
    # exercised -- there is no host-side pad/slice anymore.
    B = 1000       # batch   -> tiles of 256 rows: 4 grid steps, last one ragged
    X1_DIM = 128   # x1_dim
    X2_DIM = 256   # x2_dim

    key = jax.random.PRNGKey(0)
    k1, k2, k3, k4, k5, k6 = jax.random.split(key, 6)

    x1 = jax.random.normal(k1, (B, X1_DIM), dtype=jnp.float32)
    x2 = jax.random.normal(k2, (B, X2_DIM), dtype=jnp.float32)

    # PyTorch nn.Linear shapes: (out, in) / (out,)
    w_proj = jax.random.normal(k3, (X1_DIM, X2_DIM), dtype=jnp.float32) * 0.05
    b_proj = jax.random.normal(k4, (X1_DIM,), dtype=jnp.float32) * 0.05
    w_z = jax.random.normal(k5, (X1_DIM, 2 * X1_DIM), dtype=jnp.float32) * 0.05
    b_z = jax.random.normal(k6, (X1_DIM,), dtype=jnp.float32) * 0.05

    ref = gate_reference(x1, x2, w_proj, b_proj, w_z, b_z)

    # f32 path: tight check against the reference (also exercises masking).
    params_f32 = prepare_gate_params(w_proj, b_proj, w_z, b_z)
    out = jax.block_until_ready(gate_forward(x1, x2, params_f32))
    assert out.shape == (B, X1_DIM)
    assert jnp.allclose(out, ref, atol=1e-4, rtol=1e-4), "f32 mismatch vs reference"

    # bf16 production path (mem-bound kernel -> ~2x from halved HBM bytes),
    # f32 accumulation kept inside the kernel; looser tolerance.
    params_bf16 = prepare_gate_params(w_proj, b_proj, w_z, b_z, dtype=jnp.bfloat16)
    out_bf16 = jax.block_until_ready(
        gate_forward(x1.astype(jnp.bfloat16), x2.astype(jnp.bfloat16), params_bf16))
    assert out_bf16.shape == (B, X1_DIM)
    assert jnp.allclose(out_bf16.astype(jnp.float32), ref, atol=1e-1, rtol=1e-1), \
        "bf16 mismatch vs reference"

    print("KERNEL_OK")
</pallas_src>

<mosaic_0001>
module attributes {stable_mosaic.version = 11 : i64} {
  func.func @gate_kernel(%arg0: i32, %arg1: memref<256x128xf32, #tpu.memory_space<vmem>>, %arg2: memref<256x256xf32, #tpu.memory_space<vmem>>, %arg3: memref<256x128xf32, #tpu.memory_space<vmem>>, %arg4: memref<1x128xf32, #tpu.memory_space<vmem>>, %arg5: memref<128x128xf32, #tpu.memory_space<vmem>>, %arg6: memref<128x128xf32, #tpu.memory_space<vmem>>, %arg7: memref<1x128xf32, #tpu.memory_space<vmem>>, %arg8: memref<256x128xf32, #tpu.memory_space<vmem>>) attributes {dimension_semantics = [#tpu.dimension_semantics<parallel>], iteration_bounds = array<i64: 4>, scalar_prefetch = 0 : i64, scratch_operands = 0 : i64, tpu.core_type = #tpu.core_type<tc>, window_params = [{transform_indices = @transform_0, window_bounds = array<i64: 256, 128>}, {transform_indices = @transform_1, window_bounds = array<i64: 256, 256>}, {pipeline_mode = #tpu.pipeline_mode<synchronous>, transform_indices = @transform_2, window_bounds = array<i64: 256, 128>}, {pipeline_mode = #tpu.pipeline_mode<synchronous>, transform_indices = @transform_3, window_bounds = array<i64: 1, 128>}, {pipeline_mode = #tpu.pipeline_mode<synchronous>, transform_indices = @transform_4, window_bounds = array<i64: 128, 128>}, {pipeline_mode = #tpu.pipeline_mode<synchronous>, transform_indices = @transform_5, window_bounds = array<i64: 128, 128>}, {pipeline_mode = #tpu.pipeline_mode<synchronous>, transform_indices = @transform_6, window_bounds = array<i64: 1, 128>}, {transform_indices = @transform_7, window_bounds = array<i64: 256, 128>}]} {
    %c0 = arith.constant 0 : index
    %c0_0 = arith.constant 0 : index
    %0 = vector.load %arg1[%c0, %c0_0] : memref<256x128xf32, #tpu.memory_space<vmem>>, vector<256x128xf32>
    %c0_1 = arith.constant 0 : index
    %c0_2 = arith.constant 0 : index
    %1 = vector.load %arg2[%c0_1, %c0_2] : memref<256x256xf32, #tpu.memory_space<vmem>>, vector<256x256xf32>
    %c0_3 = arith.constant 0 : index
    %c0_4 = arith.constant 0 : index
    %2 = vector.load %arg3[%c0_3, %c0_4] : memref<256x128xf32, #tpu.memory_space<vmem>>, vector<256x128xf32>
    %cst = arith.constant dense<0.000000e+00> : vector<256x128xf32>
    %3 = tpu.matmul %1, %2, %cst {dimension_numbers = #tpu.dot_dimension_numbers<[1], [0], [0], [1], [0, 0, 1, 1], [], []>} : vector<256x256xf32>, vector<256x128xf32>, vector<256x128xf32> -> vector<256x128xf32>
    %c0_5 = arith.constant 0 : index
    %c0_6 = arith.constant 0 : index
    %4 = vector.load %arg4[%c0_5, %c0_6] : memref<1x128xf32, #tpu.memory_space<vmem>>, vector<1x128xf32>
    %5 = vector.broadcast %4 : vector<1x128xf32> to vector<256x128xf32>
    %6 = arith.addf %3, %5 : vector<256x128xf32>
    %c0_7 = arith.constant 0 : index
    %c0_8 = arith.constant 0 : index
    %7 = vector.load %arg5[%c0_7, %c0_8] : memref<128x128xf32, #tpu.memory_space<vmem>>, vector<128x128xf32>
    %cst_9 = arith.constant dense<0.000000e+00> : vector<256x128xf32>
    %8 = tpu.matmul %0, %7, %cst_9 {dimension_numbers = #tpu.dot_dimension_numbers<[1], [0], [0], [1], [0, 0, 1, 1], [], []>} : vector<256x128xf32>, vector<128x128xf32>, vector<256x128xf32> -> vector<256x128xf32>
    %c0_10 = arith.constant 0 : index
    %c0_11 = arith.constant 0 : index
    %9 = vector.load %arg6[%c0_10, %c0_11] : memref<128x128xf32, #tpu.memory_space<vmem>>, vector<128x128xf32>
    %cst_12 = arith.constant dense<0.000000e+00> : vector<256x128xf32>
    %10 = tpu.matmul %6, %9, %cst_12 {dimension_numbers = #tpu.dot_dimension_numbers<[1], [0], [0], [1], [0, 0, 1, 1], [], []>} : vector<256x128xf32>, vector<128x128xf32>, vector<256x128xf32> -> vector<256x128xf32>
    %11 = arith.addf %8, %10 : vector<256x128xf32>
    %c0_13 = arith.constant 0 : index
    %c0_14 = arith.constant 0 : index
    %12 = vector.load %arg7[%c0_13, %c0_14] : memref<1x128xf32, #tpu.memory_space<vmem>>, vector<1x128xf32>
    %13 = vector.broadcast %12 : vector<1x128xf32> to vector<256x128xf32>
    %14 = arith.addf %11, %13 : vector<256x128xf32>
    %15 = arith.negf %14 : vector<256x128xf32>
    %16 = math.exp %15 : vector<256x128xf32>
    %cst_15 = arith.constant 1.000000e+00 : f32
    %17 = vector.broadcast %cst_15 : f32 to vector<256x128xf32>
    %18 = arith.addf %17, %16 : vector<256x128xf32>
    %19 = arith.divf %17, %18 : vector<256x128xf32>
    %20 = arith.mulf %19, %6 : vector<256x128xf32>
    %21 = arith.addf %0, %20 : vector<256x128xf32>
    %c0_16 = arith.constant 0 : index
    %c0_17 = arith.constant 0 : index
    %22 = vector.load %arg8[%c0_16, %c0_17] : memref<256x128xf32, #tpu.memory_space<vmem>>, vector<256x128xf32>
    tpu.vector_store %arg8[%c0_16, %c0_17], %21 {strides = array<i32>} : memref<256x128xf32, #tpu.memory_space<vmem>>, vector<256x128xf32>,
    return
  }
  func.func @transform_0(%arg0: i32) -> (i32, i32) {
    %c0_i32 = arith.constant 0 : i32
    %c0_i32_0 = arith.constant 0 : i32
    return %arg0, %c0_i32 : i32, i32
  }
  func.func @transform_1(%arg0: i32) -> (i32, i32) {
    %c0_i32 = arith.constant 0 : i32
    %c0_i32_0 = arith.constant 0 : i32
    return %arg0, %c0_i32 : i32, i32
  }
  func.func @transform_2(%arg0: i32) -> (i32, i32) {
    %c0_i32 = arith.constant 0 : i32
    %c0_i32_0 = arith.constant 0 : i32
    %c0_i32_1 = arith.constant 0 : i32
    return %c0_i32, %c0_i32_0 : i32, i32
  }
  func.func @transform_3(%arg0: i32) -> (i32, i32) {
    %c0_i32 = arith.constant 0 : i32
    %c0_i32_0 = arith.constant 0 : i32
    %c0_i32_1 = arith.constant 0 : i32
    return %c0_i32, %c0_i32_0 : i32, i32
  }
  func.func @transform_4(%arg0: i32) -> (i32, i32) {
    %c0_i32 = arith.constant 0 : i32
    %c0_i32_0 = arith.constant 0 : i32
    %c0_i32_1 = arith.constant 0 : i32
    return %c0_i32, %c0_i32_0 : i32, i32
  }
  func.func @transform_5(%arg0: i32) -> (i32, i32) {
    %c0_i32 = arith.constant 0 : i32
    %c0_i32_0 = arith.constant 0 : i32
    %c0_i32_1 = arith.constant 0 : i32
    return %c0_i32, %c0_i32_0 : i32, i32
  }
  func.func @transform_6(%arg0: i32) -> (i32, i32) {
    %c0_i32 = arith.constant 0 : i32
    %c0_i32_0 = arith.constant 0 : i32
    %c0_i32_1 = arith.constant 0 : i32
    return %c0_i32, %c0_i32_0 : i32, i32
  }
  func.func @transform_7(%arg0: i32) -> (i32, i32) {
    %c0_i32 = arith.constant 0 : i32
    %c0_i32_0 = arith.constant 0 : i32
    return %arg0, %c0_i32 : i32, i32
  }
}

</mosaic_0001>

<llo_original>
// kernel: gate_forward.1
$region0: #{gate_forward.1}
  #allocation0 [shape = 'u32[]', space=smem, size = 0x4, offset = 0x4, fixed_abs, tag = 'smem constant byte address 0x4 - core index']
  #allocation1 [shape = 'u32[144,128]{1,0:T(1,128)}', space=vmem, size = 0x12000, scoped, tag = 'internal scratch']
  %s0 = inlined_call_operand.hbm [shape: f32[1000,128], index: 0, kind: input, shape index: {}]
  %s1 = inlined_call_operand.hbm [shape: f32[1000,256], index: 1, kind: input, shape index: {}]
  %s2 = inlined_call_operand.hbm [shape: f32[256,128], index: 2, kind: input, shape index: {}]
  %s3 = inlined_call_operand.vmem [shape: f32[1,128], index: 3, kind: input, shape index: {}]
  %s4 = inlined_call_operand.hbm [shape: f32[128,128], index: 4, kind: input, shape index: {}]
  %s5 = inlined_call_operand.hbm [shape: f32[128,128], index: 5, kind: input, shape index: {}]
  %s6 = inlined_call_operand.vmem [shape: f32[1,128], index: 6, kind: input, shape index: {}]
  %s7 = inlined_call_operand.hbm [shape: f32[1000,128], index: 7, kind: output, shape index: {}]
  %s8 = sld [smem:[#allocation0]]
  $region81: #{gate_forward.1} parent=0
    _
  %s10 = ssub.s32 1, %s8
  %s11 = scalar_select 0, %s10, %s8
  $region1: #{gate_forward.1} parent=0
    #allocation2 [shape = 'u8[262144]{0}', space=vmem, size = 0x40000, scoped, tag = 'input window, operand 0']
    #allocation3 [shape = 's32[2]{0}', space=sflag, size = 0x8, scoped, tag = 'scoped memory for gate_forward.1']
    #allocation4 [shape = 's32[2]{0}', space=sflag, size = 0x8, scoped, tag = 'scoped memory for gate_forward.1']
    #allocation5 [shape = 'u8[524288]{0}', space=vmem, size = 0x80000, scoped, tag = 'input window, operand 1']
    #allocation6 [shape = 's32[2]{0}', space=sflag, size = 0x8, scoped, tag = 'scoped memory for gate_forward.1']
    #allocation7 [shape = 'u8[131072]{0}', space=vmem, size = 0x20000, scoped, tag = 'input window, operand 2, single buffered']
    #allocation8 [shape = 'u8[65536]{0}', space=vmem, size = 0x10000, scoped, tag = 'input window, operand 4, single buffered']
    #allocation9 [shape = 's32[1]{0}', space=sflag, size = 0x4, scoped, tag = 'scoped memory for gate_forward.1']
    #allocation10 [shape = 'u8[65536]{0}', space=vmem, size = 0x10000, scoped, tag = 'input window, operand 5, single buffered']
    #allocation11 [shape = 'u8[262144]{0}', space=vmem, size = 0x40000, scoped, tag = 'output window, operand 0']
    %12 = vsyncpa [#allocation3], 0
    %s13 = scalar_lea.sflag [#allocation3], 1
    %14 = vsyncpa %s13, 0
    %15 = vsyncpa [#allocation6], 0
    %s16 = scalar_lea.sflag [#allocation6], 1
    %17 = vsyncpa %s16, 0
    %18 = vsyncpa [#allocation9], 0
    %19 = vsyncpa [#allocation4], 0
    %s20 = scalar_lea.sflag [#allocation4], 1
    %21 = vsyncpa %s20, 0
    loop: start=0, step=1, limit=6
    $region2: #{gate_forward.1} parent=1 // loop_pre_header
      _
    $region3: #{gate_forward.1} parent=1 // loop_header
      %s23 = sphi 0, %s27
      %p24 = scmp.ge.s32.totalorder %s23, 6
      %s33 = sphi 0, %s35
      %s36 = sphi 0, %s33
      %s37 = sphi 0, %s36
      %s53 = sphi 0, %s37
      %s59 = sphi 0, %s61
      %s62 = sphi 0, %s59
      %s63 = sphi 0, %s62
      %s79 = sphi 0, %s63
      %s83 = sphi 0, %s83
      %s85 = sphi 0, %s83
      %s86 = sphi 0, %s85
      %s100 = sphi 0, %s86
      %s104 = sphi 0, %s104
      %s106 = sphi 0, %s104
      %s107 = sphi 0, %s106
      %s121 = sphi 0, %s107
      %s125 = sphi 0, %s125
      %s127 = sphi 0, %s125
      %s128 = sphi 0, %s127
      %s142 = sphi 0, %s128
      %s146 = sphi 0, %s146
      %s148 = sphi 0, %s146
      %s149 = sphi 0, %s148
      %s163 = sphi 0, %s149
      %s167 = sphi 0, %s167
      %s169 = sphi 0, %s167
      %s170 = sphi 0, %s169
      %s184 = sphi 0, %s170
      %s190 = sphi 0, %s192
      %s193 = sphi 0, %s190
      %s194 = sphi 0, %s193
      %s210 = sphi 0, %s194
    $region4: #{gate_forward.1} parent=1 // loop_header_branch
      %26 = sbr.rel (%p24) target = $region8
    $region5: #{gate_forward.1} parent=1 // loop_body
      %s28 = ssub.s32 %s23, 1
      %s29 = ssub.s32 %s23, 2
      %s30 = sadd.s32 %s23, 1
      %s31 = ssub.s32 %s23, %s30
      %p32 = scmp.eq.s32.totalorder %s31, 0
      %s34 = sadd.s32 %s33, 1
      %s35 = scalar_select %p32, %s33, %s34
      %p38 = pneg %p32
      %p39 = scmp.eq.s32.totalorder %s23, 3
      %p40 = por %p38, %p39
      %p41 = scmp.ne.s32.totalorder %s33, %s36
      %p42 = scmp.eq.s32.totalorder %s23, 0
      %p43 = por %p41, %p42
      %p44 = scmp.ne.s32.totalorder %s33, %s36
      %p45 = scmp.eq.s32.totalorder %s28, 3
      %p46 = por %p44, %p45
      %p47 = scmp.ne.s32.totalorder %s36, %s37
      %p48 = scmp.eq.s32.totalorder %s28, 0
      %p49 = por %p47, %p48
      %p50 = scmp.ne.s32.totalorder %s36, %s37
      %p51 = scmp.eq.s32.totalorder %s29, 3
      %p52 = por %p50, %p51
      %p54 = scmp.ne.s32.totalorder %s37, %s53
      %p55 = scmp.eq.s32.totalorder %s29, 0
      %p56 = por %p54, %p55
      %s57 = ssub.s32 %s23, %s30
      %p58 = scmp.eq.s32.totalorder %s57, 0
      %s60 = sadd.s32 %s59, 1
      %s61 = scalar_select %p58, %s59, %s60
      %p64 = pneg %p58
      %p65 = scmp.eq.s32.totalorder %s23, 3
      %p66 = por %p64, %p65
      %p67 = scmp.ne.s32.totalorder %s59, %s62
      %p68 = scmp.eq.s32.totalorder %s23, 0
      %p69 = por %p67, %p68
      %p70 = scmp.ne.s32.totalorder %s59, %s62
      %p71 = scmp.eq.s32.totalorder %s28, 3
      %p72 = por %p70, %p71
      %p73 = scmp.ne.s32.totalorder %s62, %s63
      %p74 = scmp.eq.s32.totalorder %s28, 0
      %p75 = por %p73, %p74
      %p76 = scmp.ne.s32.totalorder %s62, %s63
      %p77 = scmp.eq.s32.totalorder %s29, 3
      %p78 = por %p76, %p77
      %p80 = scmp.ne.s32.totalorder %s63, %s79
      %p81 = scmp.eq.s32.totalorder %s29, 0
      %p82 = por %p80, %p81
      %s84 = sadd.s32 %s83, 1
      %p87 = scmp.eq.s32.totalorder %s23, 3
      %p88 = scmp.ne.s32.totalorder %s83, %s85
      %p89 = scmp.eq.s32.totalorder %s23, 0
      %p90 = por %p88, %p89
      %p91 = scmp.ne.s32.totalorder %s83, %s85
      %p92 = scmp.eq.s32.totalorder %s28, 3
      %p93 = por %p91, %p92
      %p94 = scmp.ne.s32.totalorder %s85, %s86
      %p95 = scmp.eq.s32.totalorder %s28, 0
      %p96 = por %p94, %p95
      %p97 = scmp.ne.s32.totalorder %s85, %s86
      %p98 = scmp.eq.s32.totalorder %s29, 3
      %p99 = por %p97, %p98
      %p101 = scmp.ne.s32.totalorder %s86, %s100
      %p102 = scmp.eq.s32.totalorder %s29, 0
      %p103 = por %p101, %p102
      %s105 = sadd.s32 %s104, 1
      %p108 = scmp.eq.s32.totalorder %s23, 3
      %p109 = scmp.ne.s32.totalorder %s104, %s106
      %p110 = scmp.eq.s32.totalorder %s23, 0
      %p111 = por %p109, %p110
      %p112 = scmp.ne.s32.totalorder %s104, %s106
      %p113 = scmp.eq.s32.totalorder %s28, 3
      %p114 = por %p112, %p113
      %p115 = scmp.ne.s32.totalorder %s106, %s107
      %p116 = scmp.eq.s32.totalorder %s28, 0
      %p117 = por %p115, %p116
      %p118 = scmp.ne.s32.totalorder %s106, %s107
      %p119 = scmp.eq.s32.totalorder %s29, 3
      %p120 = por %p118, %p119
      %p122 = scmp.ne.s32.totalorder %s107, %s121
      %p123 = scmp.eq.s32.totalorder %s29, 0
      %p124 = por %p122, %p123
      %s126 = sadd.s32 %s125, 1
      %p129 = scmp.eq.s32.totalorder %s23, 3
      %p130 = scmp.ne.s32.totalorder %s125, %s127
      %p131 = scmp.eq.s32.totalorder %s23, 0
      %p132 = por %p130, %p131
      %p133 = scmp.ne.s32.totalorder %s125, %s127
      %p134 = scmp.eq.s32.totalorder %s28, 3
      %p135 = por %p133, %p134
      %p136 = scmp.ne.s32.totalorder %s127, %s128
      %p137 = scmp.eq.s32.totalorder %s28, 0
      %p138 = por %p136, %p137
      %p139 = scmp.ne.s32.totalorder %s127, %s128
      %p140 = scmp.eq.s32.totalorder %s29, 3
      %p141 = por %p139, %p140
      %p143 = scmp.ne.s32.totalorder %s128, %s142
      %p144 = scmp.eq.s32.totalorder %s29, 0
      %p145 = por %p143, %p144
      %s147 = sadd.s32 %s146, 1
      %p150 = scmp.eq.s32.totalorder %s23, 3
      %p151 = scmp.ne.s32.totalorder %s146, %s148
      %p152 = scmp.eq.s32.totalorder %s23, 0
      %p153 = por %p151, %p152
      %p154 = scmp.ne.s32.totalorder %s146, %s148
      %p155 = scmp.eq.s32.totalorder %s28, 3
      %p156 = por %p154, %p155
      %p157 = scmp.ne.s32.totalorder %s148, %s149
      %p158 = scmp.eq.s32.totalorder %s28, 0
      %p159 = por %p157, %p158
      %p160 = scmp.ne.s32.totalorder %s148, %s149
      %p161 = scmp.eq.s32.totalorder %s29, 3
      %p162 = por %p160, %p161
      %p164 = scmp.ne.s32.totalorder %s149, %s163
      %p165 = scmp.eq.s32.totalorder %s29, 0
      %p166 = por %p164, %p165
      %s168 = sadd.s32 %s167, 1
      %p171 = scmp.eq.s32.totalorder %s23, 3
      %p172 = scmp.ne.s32.totalorder %s167, %s169
      %p173 = scmp.eq.s32.totalorder %s23, 0
      %p174 = por %p172, %p173
      %p175 = scmp.ne.s32.totalorder %s167, %s169
      %p176 = scmp.eq.s32.totalorder %s28, 3
      %p177 = por %p175, %p176
      %p178 = scmp.ne.s32.totalorder %s169, %s170
      %p179 = scmp.eq.s32.totalorder %s28, 0
      %p180 = por %p178, %p179
      %p181 = scmp.ne.s32.totalorder %s169, %s170
      %p182 = scmp.eq.s32.totalorder %s29, 3
      %p183 = por %p181, %p182
      %p185 = scmp.ne.s32.totalorder %s170, %s184
      %p186 = scmp.eq.s32.totalorder %s29, 0
      %p187 = por %p185, %p186
      %s188 = ssub.s32 %s23, %s30
      %p189 = scmp.eq.s32.totalorder %s188, 0
      %s191 = sadd.s32 %s190, 1
      %s192 = scalar_select %p189, %s190, %s191
      %p195 = pneg %p189
      %p196 = scmp.eq.s32.totalorder %s23, 3
      %p197 = por %p195, %p196
      %p198 = scmp.ne.s32.totalorder %s190, %s193
      %p199 = scmp.eq.s32.totalorder %s23, 0
      %p200 = por %p198, %p199
      %p201 = scmp.ne.s32.totalorder %s190, %s193
      %p202 = scmp.eq.s32.totalorder %s28, 3
      %p203 = por %p201, %p202
      %p204 = scmp.ne.s32.totalorder %s193, %s194
      %p205 = scmp.eq.s32.totalorder %s28, 0
      %p206 = por %p204, %p205
      %p207 = scmp.ne.s32.totalorder %s193, %s194
      %p208 = scmp.eq.s32.totalorder %s29, 3
      %p209 = por %p207, %p208
      %p211 = scmp.ne.s32.totalorder %s194, %s210
      %p212 = scmp.eq.s32.totalorder %s29, 0
      %p213 = por %p211, %p212
      %p214 = scmp.le.s32.totalorder 1, %s23
      %p215 = scmp.lt.s32.totalorder %s23, 5
      %p216 = pnand %p214, %p215
      %p217 = pneg %p216
      // Predicated region
      $region9: #{gate_forward.1} parent=5 // pred_check
        _
      $region10: #{gate_forward.1} parent=5 // pred_check_branch
        %219 = sbr.rel (%p216) target = $region12
      $region11: #{gate_forward.1} parent=5 // pred_region
        %s220 = ssub.s32 %s23, 1
        // Predicated region
        $region13: #{gate_forward.1} parent=11 // pred_check
          %p221 = pneg %p96
        $region14: #{gate_forward.1} parent=11 // pred_check_branch
          %223 = sbr.rel (%p221) target = $region16
        $region15: #{gate_forward.1} parent=11 // pred_region
          %s225 = ssub.s32 4096, 4096
          %226 = vsyncadd [#allocation6], %s225
          %s227 = sshll.u32 [#allocation7], 4
          %s228 = int_to_ptr.vmem [resolvable:$true] %s227
          %233 = dma.hbm_to_vmem [thread:$0]  %s2, 4096, %s228, [#allocation6], 128, 128, 8
        $region16: #{gate_forward.1} parent=11 // pred_fallthru
          _
        // Predicated region
        $region17: #{gate_forward.1} parent=11 // pred_check
          %p234 = pneg %p117
        $region18: #{gate_forward.1} parent=11 // pred_check_branch
          %236 = sbr.rel (%p234) target = $region20
        $region19: #{gate_forward.1} parent=11 // pred_region
          _
        $region20: #{gate_forward.1} parent=11 // pred_fallthru
          _
        // Predicated region
        $region21: #{gate_forward.1} parent=11 // pred_check
          %p237 = pneg %p138
        $region22: #{gate_forward.1} parent=11 // pred_check_branch
          %239 = sbr.rel (%p237) target = $region24
        $region23: #{gate_forward.1} parent=11 // pred_region
          %s241 = ssub.s32 2048, 2048
          %242 = vsyncadd [#allocation9], %s241
          %s243 = sshll.u32 [#allocation8], 4
          %s244 = int_to_ptr.vmem [resolvable:$true] %s243
          %249 = dma.hbm_to_vmem [thread:$0]  %s4, 2048, %s244, [#allocation9], 128, 128, 8
        $region24: #{gate_forward.1} parent=11 // pred_fallthru
          _
        // Predicated region
        $region25: #{gate_forward.1} parent=11 // pred_check
          %p250 = pneg %p159
        $region26: #{gate_forward.1} parent=11 // pred_check_branch
          %252 = sbr.rel (%p250) target = $region28
        $region27: #{gate_forward.1} parent=11 // pred_region
          %s254 = ssub.s32 2048, 2048
          %255 = vsyncadd [#allocation9], %s254
          %s256 = sshll.u32 [#allocation10], 4
          %s257 = int_to_ptr.vmem [resolvable:$true] %s256
          %262 = dma.hbm_to_vmem [thread:$0]  %s5, 2048, %s257, [#allocation9], 128, 128, 8
        $region28: #{gate_forward.1} parent=11 // pred_fallthru
          _
        // Predicated region
        $region29: #{gate_forward.1} parent=11 // pred_check
          %p263 = pneg %p180
        $region30: #{gate_forward.1} parent=11 // pred_check_branch
          %265 = sbr.rel (%p263) target = $region32
        $region31: #{gate_forward.1} parent=11 // pred_region
          _
        $region32: #{gate_forward.1} parent=11 // pred_fallthru
          _
      $region12: #{gate_forward.1} parent=5 // pred_fallthru
        _
      %p266 = scmp.lt.s32.totalorder %s23, 4
      // Predicated region
      $region33: #{gate_forward.1} parent=5 // pred_check
        %p267 = pneg %p266
      $region34: #{gate_forward.1} parent=5 // pred_check_branch
        %269 = sbr.rel (%p267) target = $region36
      $region35: #{gate_forward.1} parent=5 // pred_region
        // Predicated region
        $region37: #{gate_forward.1} parent=35 // pred_check
          %p270 = pneg %p43
        $region38: #{gate_forward.1} parent=35 // pred_check_branch
          %272 = sbr.rel (%p270) target = $region40
        $region39: #{gate_forward.1} parent=35 // pred_region
          %s273 = sand.u32 %s33, 1
          %s274 = scalar_lea.sflag [#allocation3], %s273
          %s275 = sand.u32 %s33, 1
          %s276 = smul.addr %s275, 256
          %s277 = scalar_lea.vmem [#allocation2], %s276
          %s278 = smul.u32 32, %s23
          %s279 = ssub.s32 125, %s278
          %p280 = scmp.lt.s32.totalorder %s279, 32
          %s281 = scalar_select %p280, %s279, 32
          %s282 = smul.u32 128, %s281
          %s284 = ssub.s32 4096, %s282
          %285 = vsyncadd %s274, %s284
          %p286 = scmp.ne.s32.totalorder 0, %s282
          %s287 = smul.addr %s278, 128
          %s288 = scalar_lea.hbm %s0, %s287
          %s289 = smul.u32 8, %s281
          %s290 = sshll.u32 %s277, 4
          %s291 = int_to_ptr.vmem [resolvable:$true] %s290
          %s292 = sshll.u32 %s289, 4
          %296 = dma.hbm_to_vmem [thread:$0]  (%p286), %s288, %s292, %s291, %s274, 128, 128, 8
        $region40: #{gate_forward.1} parent=35 // pred_fallthru
          _
        // Predicated region
        $region41: #{gate_forward.1} parent=35 // pred_check
          %p297 = pneg %p69
        $region42: #{gate_forward.1} parent=35 // pred_check_branch
          %299 = sbr.rel (%p297) target = $region44
        $region43: #{gate_forward.1} parent=35 // pred_region
          %s300 = sand.u32 %s23, 1
          %s301 = scalar_lea.sflag [#allocation6], %s300
          %s302 = sand.u32 %s59, 1
          %s303 = smul.addr %s302, 512
          %s304 = scalar_lea.vmem [#allocation5], %s303
          %s305 = smul.u32 32, %s23
          %s306 = ssub.s32 125, %s305
          %p307 = scmp.lt.s32.totalorder %s306, 32
          %s308 = scalar_select %p307, %s306, 32
          %s309 = smul.u32 128, %s308
          %s310 = smul.u32 %s309, 2
          %s312 = ssub.s32 8192, %s310
          %313 = vsyncadd %s301, %s312
          %p314 = scmp.ne.s32.totalorder 0, %s310
          %s315 = smul.addr %s305, 2
          %s316 = smul.addr %s315, 128
          %s317 = scalar_lea.hbm %s1, %s316
          %s318 = smul.u32 16, %s308
          %s319 = sshll.u32 %s304, 4
          %s320 = int_to_ptr.vmem [resolvable:$true] %s319
          %s321 = sshll.u32 %s318, 4
          %325 = dma.hbm_to_vmem [thread:$0]  (%p314), %s317, %s321, %s320, %s301, 256, 256, 16
        $region44: #{gate_forward.1} parent=35 // pred_fallthru
          _
      $region36: #{gate_forward.1} parent=5 // pred_fallthru
        _
      %p326 = scmp.le.s32.totalorder 1, %s23
      %p327 = scmp.lt.s32.totalorder %s23, 5
      %p328 = pnand %p326, %p327
      %p329 = pneg %p328
      // Predicated region
      $region45: #{gate_forward.1} parent=5 // pred_check
        _
      $region46: #{gate_forward.1} parent=5 // pred_check_branch
        %331 = sbr.rel (%p328) target = $region48
      $region47: #{gate_forward.1} parent=5 // pred_region
        %s332 = ssub.s32 %s23, 1
        %s333 = sand.u32 %s36, 1
        %s334 = scalar_lea.sflag [#allocation3], %s333
        %s335 = sand.u32 %s36, 1
        %s336 = smul.addr %s335, 256
        %s337 = scalar_lea.vmem [#allocation2], %s336
        // Predicated region
        $region49: #{gate_forward.1} parent=47 // pred_check
          %p338 = pneg %p49
        $region50: #{gate_forward.1} parent=47 // pred_check_branch
          %340 = sbr.rel (%p338) target = $region52
        $region51: #{gate_forward.1} parent=47 // pred_region
          %341 = dma.done %s334, 4096
        $region52: #{gate_forward.1} parent=47 // pred_fallthru
          _
        %s342 = sand.u32 %s28, 1
        %s343 = scalar_lea.sflag [#allocation6], %s342
        %s344 = sand.u32 %s62, 1
        %s345 = smul.addr %s344, 512
        %s346 = scalar_lea.vmem [#allocation5], %s345
        // Predicated region
        $region53: #{gate_forward.1} parent=47 // pred_check
          %p347 = pneg %p75
        $region54: #{gate_forward.1} parent=47 // pred_check_branch
          %349 = sbr.rel (%p347) target = $region56
        $region55: #{gate_forward.1} parent=47 // pred_region
          %350 = dma.done %s343, 8192
        $region56: #{gate_forward.1} parent=47 // pred_fallthru
          _
        // Predicated region
        $region57: #{gate_forward.1} parent=47 // pred_check
          %p351 = pneg %p96
        $region58: #{gate_forward.1} parent=47 // pred_check_branch
          %353 = sbr.rel (%p351) target = $region60
        $region59: #{gate_forward.1} parent=47 // pred_region
          %354 = dma.done [#allocation6], 4096
        $region60: #{gate_forward.1} parent=47 // pred_fallthru
          _
        // Predicated region
        $region61: #{gate_forward.1} parent=47 // pred_check
          %p355 = pneg %p138
        $region62: #{gate_forward.1} parent=47 // pred_check_branch
          %357 = sbr.rel (%p355) target = $region64
        $region63: #{gate_forward.1} parent=47 // pred_region
          %358 = dma.done [#allocation9], 2048
        $region64: #{gate_forward.1} parent=47 // pred_fallthru
          _
        // Predicated region
        $region65: #{gate_forward.1} parent=47 // pred_check
          %p359 = pneg %p159
        $region66: #{gate_forward.1} parent=47 // pred_check_branch
          %361 = sbr.rel (%p359) target = $region68
        $region67: #{gate_forward.1} parent=47 // pred_region
          %362 = dma.done [#allocation9], 2048
        $region68: #{gate_forward.1} parent=47 // pred_fallthru
          _
        %s363 = sand.u32 %s36, 1
        %s364 = scalar_lea.sflag [#allocation3], %s363
        %s365 = sand.u32 %s36, 1
        %s366 = smul.addr %s365, 256
        %s367 = scalar_lea.vmem [#allocation2], %s366
        %p368 = pneg %p49
        %p369 = pneg %p46
        %s370 = sand.u32 %s28, 1
        %s371 = scalar_lea.sflag [#allocation6], %s370
        %s372 = sand.u32 %s62, 1
        %s373 = smul.addr %s372, 512
        %s374 = scalar_lea.vmem [#allocation5], %s373
        %p375 = pneg %p75
        %p376 = pneg %p72
        %p377 = pneg %p96
        %p378 = pneg %p93
        %p379 = pneg %p117
        %p380 = pneg %p114
        %p381 = pneg %p138
        %p382 = pneg %p135
        %p383 = pneg %p159
        %p384 = pneg %p156
        %p385 = pneg %p180
        %p386 = pneg %p177
        %p387 = pneg %p206
        %p388 = pneg %p203
        %s389 = sand.u32 %s193, 1
        %s390 = scalar_lea.sflag [#allocation4], %s389
        %s391 = sand.u32 %s193, 1
        %s392 = smul.addr %s391, 256
        %s393 = scalar_lea.vmem [#allocation11], %s392
        %s394 = smul.u32 32, %s28
        %s395 = ssub.s32 125, %s394
        %p396 = scmp.lt.s32.totalorder %s395, 32
        %s397 = scalar_select %p396, %s395, 32
        %s398 = smul.u32 128, %s397
        %s399 = smul.u32 32, %s28
        %s400 = ssub.s32 125, %s399
        %p401 = scmp.lt.s32.totalorder %s400, 32
        %s402 = scalar_select %p401, %s400, 32
        %s403 = smul.u32 128, %s402
        %s404 = smul.u32 %s403, 2
        %s405 = smul.u32 32, %s28
        %s406 = ssub.s32 125, %s405
        %p407 = scmp.lt.s32.totalorder %s406, 32
        %s408 = scalar_select %p407, %s406, 32
        %s409 = smul.u32 128, %s408
        %v410 = vld [vmem:[%s337] sm:$0xff]
        %v411 = vld [vmem:[%s337 + $0x8] sm:$0xff]
        %v412 = vld [vmem:[%s337 + $0x10] sm:$0xff]
        %v413 = vld [vmem:[%s337 + $0x18] sm:$0xff]
        %v414 = vld [vmem:[%s337 + $0x20] sm:$0xff]
        %v415 = vld [vmem:[%s337 + $0x28] sm:$0xff]
        %v416 = vld [vmem:[%s337 + $0x30] sm:$0xff]
        %v417 = vld [vmem:[%s337 + $0x38] sm:$0xff]
        %v418 = vld [vmem:[%s337 + $0x40] sm:$0xff]
        %v419 = vld [vmem:[%s337 + $0x48] sm:$0xff]
        %v420 = vld [vmem:[%s337 + $0x50] sm:$0xff]
        %v421 = vld [vmem:[%s337 + $0x58] sm:$0xff]
        %v422 = vld [vmem:[%s337 + $0x60] sm:$0xff]
        %v423 = vld [vmem:[%s337 + $0x68] sm:$0xff]
        %v424 = vld [vmem:[%s337 + $0x70] sm:$0xff]
        %v425 = vld [vmem:[%s337 + $0x78] sm:$0xff]
        %v426 = vld [vmem:[%s337 + $0x80] sm:$0xff]
        %v427 = vld [vmem:[%s337 + $0x88] sm:$0xff]
        %v428 = vld [vmem:[%s337 + $0x90] sm:$0xff]
        %v429 = vld [vmem:[%s337 + $0x98] sm:$0xff]
        %v430 = vld [vmem:[%s337 + $0xa0] sm:$0xff]
        %v431 = vld [vmem:[%s337 + $0xa8] sm:$0xff]
        %v432 = vld [vmem:[%s337 + $0xb0] sm:$0xff]
        %v433 = vld [vmem:[%s337 + $0xb8] sm:$0xff]
        %v434 = vld [vmem:[%s337 + $0xc0] sm:$0xff]
        %v435 = vld [vmem:[%s337 + $0xc8] sm:$0xff]
        %v436 = vld [vmem:[%s337 + $0xd0] sm:$0xff]
        %v437 = vld [vmem:[%s337 + $0xd8] sm:$0xff]
        %v438 = vld [vmem:[%s337 + $0xe0] sm:$0xff]
        %v439 = vld [vmem:[%s337 + $0xe8] sm:$0xff]
        %v440 = vld [vmem:[%s337 + $0xf0] sm:$0xff]
        %v441 = vld [vmem:[%s337 + $0xf8] sm:$0xff]
        %v442 = vld [vmem:[%s346] sm:$0xff]
        %v443 = vld [vmem:[%s346 + $0x8] sm:$0xff]
        %v444 = vld [vmem:[%s346 + $0x10] sm:$0xff]
        %v445 = vld [vmem:[%s346 + $0x18] sm:$0xff]
        %v446 = vld [vmem:[%s346 + $0x20] sm:$0xff]
        %v447 = vld [vmem:[%s346 + $0x28] sm:$0xff]
        %v448 = vld [vmem:[%s346 + $0x30] sm:$0xff]
        %v449 = vld [vmem:[%s346 + $0x38] sm:$0xff]
        %v450 = vld [vmem:[%s346 + $0x40] sm:$0xff]
        %v451 = vld [vmem:[%s346 + $0x48] sm:$0xff]
        %v452 = vld [vmem:[%s346 + $0x50] sm:$0xff]
        %v453 = vld [vmem:[%s346 + $0x58] sm:$0xff]
        %v454 = vld [vmem:[%s346 + $0x60] sm:$0xff]
        %v455 = vld [vmem:[%s346 + $0x68] sm:$0xff]
        %v456 = vld [vmem:[%s346 + $0x70] sm:$0xff]
        %v457 = vld [vmem:[%s346 + $0x78] sm:$0xff]
        %v458 = vld [vmem:[%s346 + $0x80] sm:$0xff]
        %v459 = vld [vmem:[%s346 + $0x88] sm:$0xff]
        %v460 = vld [vmem:[%s346 + $0x90] sm:$0xff]
        %v461 = vld [vmem:[%s346 + $0x98] sm:$0xff]
        %v462 = vld [vmem:[%s346 + $0xa0] sm:$0xff]
        %v463 = vld [vmem:[%s346 + $0xa8] sm:$0xff]
        %v464 = vld [vmem:[%s346 + $0xb0] sm:$0xff]
        %v465 = vld [vmem:[%s346 + $0xb8] sm:$0xff]
        %v466 = vld [vmem:[%s346 + $0xc0] sm:$0xff]
        %v467 = vld [vmem:[%s346 + $0xc8] sm:$0xff]
        %v468 = vld [vmem:[%s346 + $0xd0] sm:$0xff]
        %v469 = vld [vmem:[%s346 + $0xd8] sm:$0xff]
        %v470 = vld [vmem:[%s346 + $0xe0] sm:$0xff]
        %v471 = vld [vmem:[%s346 + $0xe8] sm:$0xff]
        %v472 = vld [vmem:[%s346 + $0xf0] sm:$0xff]
        %v473 = vld [vmem:[%s346 + $0xf8] sm:$0xff]
        %v474 = vld [vmem:[%s346 + $0x100] sm:$0xff]
        %v475 = vld [vmem:[%s346 + $0x108] sm:$0xff]
        %v476 = vld [vmem:[%s346 + $0x110] sm:$0xff]
        %v477 = vld [vmem:[%s346 + $0x118] sm:$0xff]
        %v478 = vld [vmem:[%s346 + $0x120] sm:$0xff]
        %v479 = vld [vmem:[%s346 + $0x128] sm:$0xff]
        %v480 = vld [vmem:[%s346 + $0x130] sm:$0xff]
        %v481 = vld [vmem:[%s346 + $0x138] sm:$0xff]
        %v482 = vld [vmem:[%s346 + $0x140] sm:$0xff]
        %v483 = vld [vmem:[%s346 + $0x148] sm:$0xff]
        %v484 = vld [vmem:[%s346 + $0x150] sm:$0xff]
        %v485 = vld [vmem:[%s346 + $0x158] sm:$0xff]
        %v486 = vld [vmem:[%s346 + $0x160] sm:$0xff]
        %v487 = vld [vmem:[%s346 + $0x168] sm:$0xff]
        %v488 = vld [vmem:[%s346 + $0x170] sm:$0xff]
        %v489 = vld [vmem:[%s346 + $0x178] sm:$0xff]
        %v490 = vld [vmem:[%s346 + $0x180] sm:$0xff]
        %v491 = vld [vmem:[%s346 + $0x188] sm:$0xff]
        %v492 = vld [vmem:[%s346 + $0x190] sm:$0xff]
        %v493 = vld [vmem:[%s346 + $0x198] sm:$0xff]
        %v494 = vld [vmem:[%s346 + $0x1a0] sm:$0xff]
        %v495 = vld [vmem:[%s346 + $0x1a8] sm:$0xff]
        %v496 = vld [vmem:[%s346 + $0x1b0] sm:$0xff]
        %v497 = vld [vmem:[%s346 + $0x1b8] sm:$0xff]
        %v498 = vld [vmem:[%s346 + $0x1c0] sm:$0xff]
        %v499 = vld [vmem:[%s346 + $0x1c8] sm:$0xff]
        %v500 = vld [vmem:[%s346 + $0x1d0] sm:$0xff]
        %v501 = vld [vmem:[%s346 + $0x1d8] sm:$0xff]
        %v502 = vld [vmem:[%s346 + $0x1e0] sm:$0xff]
        %v503 = vld [vmem:[%s346 + $0x1e8] sm:$0xff]
        %v504 = vld [vmem:[%s346 + $0x1f0] sm:$0xff]
        %v505 = vld [vmem:[%s346 + $0x1f8] sm:$0xff]
        %v506 = vld [vmem:[#allocation7] sm:$0xff]
        %v507 = vld [vmem:[#allocation7 + $0x8] sm:$0xff]
        %v508 = vld [vmem:[#allocation7 + $0x10] sm:$0xff]
        %v509 = vld [vmem:[#allocation7 + $0x18] sm:$0xff]
        %v510 = vld [vmem:[#allocation7 + $0x20] sm:$0xff]
        %v511 = vld [vmem:[#allocation7 + $0x28] sm:$0xff]
        %v512 = vld [vmem:[#allocation7 + $0x30] sm:$0xff]
        %v513 = vld [vmem:[#allocation7 + $0x38] sm:$0xff]
        %v514 = vld [vmem:[#allocation7 + $0x40] sm:$0xff]
        %v515 = vld [vmem:[#allocation7 + $0x48] sm:$0xff]
        %v516 = vld [vmem:[#allocation7 + $0x50] sm:$0xff]
        %v517 = vld [vmem:[#allocation7 + $0x58] sm:$0xff]
        %v518 = vld [vmem:[#allocation7 + $0x60] sm:$0xff]
        %v519 = vld [vmem:[#allocation7 + $0x68] sm:$0xff]
        %v520 = vld [vmem:[#allocation7 + $0x70] sm:$0xff]
        %v521 = vld [vmem:[#allocation7 + $0x78] sm:$0xff]
        %v522 = vld [vmem:[#allocation7 + $0x80] sm:$0xff]
        %v523 = vld [vmem:[#allocation7 + $0x88] sm:$0xff]
        %v524 = vld [vmem:[#allocation7 + $0x90] sm:$0xff]
        %v525 = vld [vmem:[#allocation7 + $0x98] sm:$0xff]
        %v526 = vld [vmem:[#allocation7 + $0xa0] sm:$0xff]
        %v527 = vld [vmem:[#allocation7 + $0xa8] sm:$0xff]
        %v528 = vld [vmem:[#allocation7 + $0xb0] sm:$0xff]
        %v529 = vld [vmem:[#allocation7 + $0xb8] sm:$0xff]
        %v530 = vld [vmem:[#allocation7 + $0xc0] sm:$0xff]
        %v531 = vld [vmem:[#allocation7 + $0xc8] sm:$0xff]
        %v532 = vld [vmem:[#allocation7 + $0xd0] sm:$0xff]
        %v533 = vld [vmem:[#allocation7 + $0xd8] sm:$0xff]
        %v534 = vld [vmem:[#allocation7 + $0xe0] sm:$0xff]
        %v535 = vld [vmem:[#allocation7 + $0xe8] sm:$0xff]
        %v536 = vld [vmem:[#allocation7 + $0xf0] sm:$0xff]
        %v537 = vld [vmem:[#allocation7 + $0xf8] sm:$0xff]
        %v538 = vld [vmem:[%s3] sm:$0x1]
        %v540 = vlaneseq
        %v541 = vshrl.u32 %v540, 7
        %v542 = vsub.s32 0, %v541
        %v543 = vrot.slane %v538, %v542
        %545 = vmatprep.subr.mxu0 0.0
        %546 = vmatpush1.msra.mxu0 %v521
        %547 = vmatprep.subr.mxu0 0.0
        %548 = vmatpush1.msra.mxu0 %v520
        %549 = vmatprep.subr.mxu0 0.0
        %550 = vmatpush1.msra.mxu0 %v519
        %551 = vmatprep.subr.mxu0 0.0
        %552 = vmatpush1.msra.mxu0 %v518
        %553 = vmatprep.subr.mxu0 0.0
        %554 = vmatpush1.msra.mxu0 %v517
        %555 = vmatprep.subr.mxu0 0.0
        %556 = vmatpush1.msra.mxu0 %v516
        %557 = vmatprep.subr.mxu0 0.0
        %558 = vmatpush1.msra.mxu0 %v515
        %559 = vmatprep.subr.mxu0 0.0
        %560 = vmatpush1.msra.mxu0 %v514
        %561 = vmatprep.subr.mxu0 0.0
        %562 = vmatpush1.msra.mxu0 %v513
        %563 = vmatprep.subr.mxu0 0.0
        %564 = vmatpush1.msra.mxu0 %v512
        %565 = vmatprep.subr.mxu0 0.0
        %566 = vmatpush1.msra.mxu0 %v511
        %567 = vmatprep.subr.mxu0 0.0
        %568 = vmatpush1.msra.mxu0 %v510
        %569 = vmatprep.subr.mxu0 0.0
        %570 = vmatpush1.msra.mxu0 %v509
        %571 = vmatprep.subr.mxu0 0.0
        %572 = vmatpush1.msra.mxu0 %v508
        %573 = vmatprep.subr.mxu0 0.0
        %574 = vmatpush1.msra.mxu0 %v507
        %575 = vmatprep.subr.mxu0 0.0
        %576 = vmatpush1.msra.mxu0 %v506
        %577 = vmatprep.subr.mxu0 0.0
        %578 = vmatpush2.msra.mxu0 %v537
        %579 = vmatprep.subr.mxu0 0.0
        %580 = vmatpush2.msra.mxu0 %v536
        %581 = vmatprep.subr.mxu0 0.0
        %582 = vmatpush2.msra.mxu0 %v535
        %583 = vmatprep.subr.mxu0 0.0
        %584 = vmatpush2.msra.mxu0 %v534
        %585 = vmatprep.subr.mxu0 0.0
        %586 = vmatpush2.msra.mxu0 %v533
        %587 = vmatprep.subr.mxu0 0.0
        %588 = vmatpush2.msra.mxu0 %v532
        %589 = vmatprep.subr.mxu0 0.0
        %590 = vmatpush2.msra.mxu0 %v531
        %591 = vmatprep.subr.mxu0 0.0
        %592 = vmatpush2.msra.mxu0 %v530
        %593 = vmatprep.subr.mxu0 0.0
        %594 = vmatpush2.msra.mxu0 %v529
        %595 = vmatprep.subr.mxu0 0.0
        %596 = vmatpush2.msra.mxu0 %v528
        %597 = vmatprep.subr.mxu0 0.0
        %598 = vmatpush2.msra.mxu0 %v527
        %599 = vmatprep.subr.mxu0 0.0
        %600 = vmatpush2.msra.mxu0 %v526
        %601 = vmatprep.subr.mxu0 0.0
        %602 = vmatpush2.msra.mxu0 %v525
        %603 = vmatprep.subr.mxu0 0.0
        %604 = vmatpush2.msra.mxu0 %v524
        %605 = vmatprep.subr.mxu0 0.0
        %606 = vmatpush2.msra.mxu0 %v523
        %607 = vmatprep.subr.mxu0 0.0
        %608 = vmatpush2.msra.mxu0 %v522
        %609 = vmatprep.mubr.f32.mxu0 %v443
        %610 = vmatmul.mubr.f32.gmra.mxu0 %v442
        %v611 = vpop.f32.mrf.mxu0
        %v612 = vadd.f32 %v543, %v611
        %v613 = vpop.f32.mrf.mxu0
        %614 = vmatprep.mubr.f32.mxu0 %v445
        %615 = vmatmul.mubr.f32.gmra.mxu0 %v444
        %v616 = vpop.f32.mrf.mxu0
        %v617 = vadd.f32 %v543, %v616
        %v618 = vpop.f32.mrf.mxu0
        %619 = vmatprep.mubr.f32.mxu0 %v447
        %620 = vmatmul.mubr.f32.gmra.mxu0 %v446
        %v621 = vpop.f32.mrf.mxu0
        %v622 = vadd.f32 %v543, %v621
        %v623 = vpop.f32.mrf.mxu0
        %624 = vmatprep.mubr.f32.mxu0 %v449
        %625 = vmatmul.mubr.f32.gmra.mxu0 %v448
        %v626 = vpop.f32.mrf.mxu0
        %v627 = vadd.f32 %v543, %v626
        %v628 = vpop.f32.mrf.mxu0
        %629 = vmatprep.mubr.f32.mxu0 %v451
        %630 = vmatmul.mubr.f32.gmra.mxu0 %v450
        %v631 = vpop.f32.mrf.mxu0
        %v632 = vadd.f32 %v543, %v631
        %v633 = vpop.f32.mrf.mxu0
        %634 = vmatprep.mubr.f32.mxu0 %v453
        %635 = vmatmul.mubr.f32.gmra.mxu0 %v452
        %v636 = vpop.f32.mrf.mxu0
        %v637 = vadd.f32 %v543, %v636
        %v638 = vpop.f32.mrf.mxu0
        %639 = vmatprep.mubr.f32.mxu0 %v455
        %640 = vmatmul.mubr.f32.gmra.mxu0 %v454
        %v641 = vpop.f32.mrf.mxu0
        %v642 = vadd.f32 %v543, %v641
        %v643 = vpop.f32.mrf.mxu0
        %644 = vmatprep.mubr.f32.mxu0 %v457
        %645 = vmatmul.mubr.f32.gmra.mxu0 %v456
        %v646 = vpop.f32.mrf.mxu0
        %v647 = vadd.f32 %v543, %v646
        %v648 = vpop.f32.mrf.mxu0
        %649 = vmatprep.mubr.f32.mxu0 %v459
        %650 = vmatmul.mubr.f32.gmra.mxu0 %v458
        %v651 = vpop.f32.mrf.mxu0
        %v652 = vadd.f32 %v543, %v651
        %v653 = vpop.f32.mrf.mxu0
        %654 = vmatprep.mubr.f32.mxu0 %v461
        %655 = vmatmul.mubr.f32.gmra.mxu0 %v460
        %v656 = vpop.f32.mrf.mxu0
        %v657 = vadd.f32 %v543, %v656
        %v658 = vpop.f32.mrf.mxu0
        %659 = vmatprep.mubr.f32.mxu0 %v463
        %660 = vmatmul.mubr.f32.gmra.mxu0 %v462
        %v661 = vpop.f32.mrf.mxu0
        %v662 = vadd.f32 %v543, %v661
        %v663 = vpop.f32.mrf.mxu0
        %664 = vmatprep.mubr.f32.mxu0 %v465
        %665 = vmatmul.mubr.f32.gmra.mxu0 %v464
        %v666 = vpop.f32.mrf.mxu0
        %v667 = vadd.f32 %v543, %v666
        %v668 = vpop.f32.mrf.mxu0
        %669 = vmatprep.mubr.f32.mxu0 %v467
        %670 = vmatmul.mubr.f32.gmra.mxu0 %v466
        %v671 = vpop.f32.mrf.mxu0
        %v672 = vadd.f32 %v543, %v671
        %v673 = vpop.f32.mrf.mxu0
        %674 = vmatprep.mubr.f32.mxu0 %v469
        %675 = vmatmul.mubr.f32.gmra.mxu0 %v468
        %v676 = vpop.f32.mrf.mxu0
        %v677 = vadd.f32 %v543, %v676
        %v678 = vpop.f32.mrf.mxu0
        %679 = vmatprep.mubr.f32.mxu0 %v471
        %680 = vmatmul.mubr.f32.gmra.mxu0 %v470
        %v681 = vpop.f32.mrf.mxu0
        %v682 = vadd.f32 %v543, %v681
        %v683 = vpop.f32.mrf.mxu0
        %684 = vmatprep.mubr.f32.mxu0 %v473
        %685 = vmatmul.mubr.f32.gmra.mxu0 %v472
        %v686 = vpop.f32.mrf.mxu0
        %v687 = vadd.f32 %v543, %v686
        %v688 = vpop.f32.mrf.mxu0
        %689 = vmatprep.mubr.f32.mxu0 %v475
        %690 = vmatmul.mubr.f32.gmra.mxu0 %v474
        %v691 = vpop.f32.mrf.mxu0
        %v692 = vadd.f32 %v543, %v691
        %v693 = vpop.f32.mrf.mxu0
        %694 = vmatprep.mubr.f32.mxu0 %v477
        %695 = vmatmul.mubr.f32.gmra.mxu0 %v476
        %v696 = vpop.f32.mrf.mxu0
        %v697 = vadd.f32 %v543, %v696
        %v698 = vpop.f32.mrf.mxu0
        %699 = vmatprep.mubr.f32.mxu0 %v479
        %700 = vmatmul.mubr.f32.gmra.mxu0 %v478
        %v701 = vpop.f32.mrf.mxu0
        %v702 = vadd.f32 %v543, %v701
        %v703 = vpop.f32.mrf.mxu0
        %704 = vmatprep.mubr.f32.mxu0 %v481
        %705 = vmatmul.mubr.f32.gmra.mxu0 %v480
        %v706 = vpop.f32.mrf.mxu0
        %v707 = vadd.f32 %v543, %v706
        %v708 = vpop.f32.mrf.mxu0
        %709 = vmatprep.mubr.f32.mxu0 %v483
        %710 = vmatmul.mubr.f32.gmra.mxu0 %v482
        %v711 = vpop.f32.mrf.mxu0
        %v712 = vadd.f32 %v543, %v711
        %v713 = vpop.f32.mrf.mxu0
        %714 = vmatprep.mubr.f32.mxu0 %v485
        %715 = vmatmul.mubr.f32.gmra.mxu0 %v484
        %v716 = vpop.f32.mrf.mxu0
        %v717 = vadd.f32 %v543, %v716
        %v718 = vpop.f32.mrf.mxu0
        %719 = vmatprep.mubr.f32.mxu0 %v487
        %720 = vmatmul.mubr.f32.gmra.mxu0 %v486
        %v721 = vpop.f32.mrf.mxu0
        %v722 = vadd.f32 %v543, %v721
        %v723 = vpop.f32.mrf.mxu0
        %724 = vmatprep.mubr.f32.mxu0 %v489
        %725 = vmatmul.mubr.f32.gmra.mxu0 %v488
        %v726 = vpop.f32.mrf.mxu0
        %v727 = vadd.f32 %v543, %v726
        %v728 = vpop.f32.mrf.mxu0
        %729 = vmatprep.mubr.f32.mxu0 %v491
        %730 = vmatmul.mubr.f32.gmra.mxu0 %v490
        %v731 = vpop.f32.mrf.mxu0
        %v732 = vadd.f32 %v543, %v731
        %v733 = vpop.f32.mrf.mxu0
        %734 = vmatprep.mubr.f32.mxu0 %v493
        %735 = vmatmul.mubr.f32.gmra.mxu0 %v492
        %v736 = vpop.f32.mrf.mxu0
        %v737 = vadd.f32 %v543, %v736
        %v738 = vpop.f32.mrf.mxu0
        %739 = vmatprep.mubr.f32.mxu0 %v495
        %740 = vmatmul.mubr.f32.gmra.mxu0 %v494
        %v741 = vpop.f32.mrf.mxu0
        %v742 = vadd.f32 %v543, %v741
        %v743 = vpop.f32.mrf.mxu0
        %744 = vmatprep.mubr.f32.mxu0 %v497
        %745 = vmatmul.mubr.f32.gmra.mxu0 %v496
        %v746 = vpop.f32.mrf.mxu0
        %v747 = vadd.f32 %v543, %v746
        %v748 = vpop.f32.mrf.mxu0
        %749 = vmatprep.mubr.f32.mxu0 %v499
        %750 = vmatmul.mubr.f32.gmra.mxu0 %v498
        %v751 = vpop.f32.mrf.mxu0
        %v752 = vadd.f32 %v543, %v751
        %v753 = vpop.f32.mrf.mxu0
        %754 = vmatprep.mubr.f32.mxu0 %v501
        %755 = vmatmul.mubr.f32.gmra.mxu0 %v500
        %v756 = vpop.f32.mrf.mxu0
        %v757 = vadd.f32 %v543, %v756
        %v758 = vpop.f32.mrf.mxu0
        %759 = vmatprep.mubr.f32.mxu0 %v503
        %760 = vmatmul.mubr.f32.gmra.mxu0 %v502
        %v761 = vpop.f32.mrf.mxu0
        %v762 = vadd.f32 %v543, %v761
        %v763 = vpop.f32.mrf.mxu0
        %764 = vmatprep.mubr.f32.mxu0 %v505
        %765 = vmatmul.mubr.f32.gmra.mxu0 %v504
        %v766 = vpop.f32.mrf.mxu0
        %v767 = vadd.f32 %v543, %v766
        %v768 = vpop.f32.mrf.mxu0
        %769 = vdwg.mxu0
        %v770 = vld [vmem:[#allocation8] sm:$0xff]
        %v771 = vld [vmem:[#allocation8 + $0x8] sm:$0xff]
        %v772 = vld [vmem:[#allocation8 + $0x10] sm:$0xff]
        %v773 = vld [vmem:[#allocation8 + $0x18] sm:$0xff]
        %v774 = vld [vmem:[#allocation8 + $0x20] sm:$0xff]
        %v775 = vld [vmem:[#allocation8 + $0x28] sm:$0xff]
        %v776 = vld [vmem:[#allocation8 + $0x30] sm:$0xff]
        %v777 = vld [vmem:[#allocation8 + $0x38] sm:$0xff]
        %v778 = vld [vmem:[#allocation8 + $0x40] sm:$0xff]
        %v779 = vld [vmem:[#allocation8 + $0x48] sm:$0xff]
        %v780 = vld [vmem:[#allocation8 + $0x50] sm:$0xff]
        %v781 = vld [vmem:[#allocation8 + $0x58] sm:$0xff]
        %v782 = vld [vmem:[#allocation8 + $0x60] sm:$0xff]
        %v783 = vld [vmem:[#allocation8 + $0x68] sm:$0xff]
        %v784 = vld [vmem:[#allocation8 + $0x70] sm:$0xff]
        %v785 = vld [vmem:[#allocation8 + $0x78] sm:$0xff]
        %v786 = vld [vmem:[#allocation10] sm:$0xff]
        %v787 = vld [vmem:[#allocation10 + $0x8] sm:$0xff]
        %v788 = vld [vmem:[#allocation10 + $0x10] sm:$0xff]
        %v789 = vld [vmem:[#allocation10 + $0x18] sm:$0xff]
        %v790 = vld [vmem:[#allocation10 + $0x20] sm:$0xff]
        %v791 = vld [vmem:[#allocation10 + $0x28] sm:$0xff]
        %v792 = vld [vmem:[#allocation10 + $0x30] sm:$0xff]
        %v793 = vld [vmem:[#allocation10 + $0x38] sm:$0xff]
        %v794 = vld [vmem:[#allocation10 + $0x40] sm:$0xff]
        %v795 = vld [vmem:[#allocation10 + $0x48] sm:$0xff]
        %v796 = vld [vmem:[#allocation10 + $0x50] sm:$0xff]
        %v797 = vld [vmem:[#allocation10 + $0x58] sm:$0xff]
        %v798 = vld [vmem:[#allocation10 + $0x60] sm:$0xff]
        %v799 = vld [vmem:[#allocation10 + $0x68] sm:$0xff]
        %v800 = vld [vmem:[#allocation10 + $0x70] sm:$0xff]
        %v801 = vld [vmem:[#allocation10 + $0x78] sm:$0xff]
        %802 = vmatprep.subr.mxu0 0.0
        %803 = vmatpush1.msra.mxu0 %v801
        %804 = vmatprep.subr.mxu0 0.0
        %805 = vmatpush1.msra.mxu0 %v800
        %806 = vmatprep.subr.mxu0 0.0
        %807 = vmatpush1.msra.mxu0 %v799
        %808 = vmatprep.subr.mxu0 0.0
        %809 = vmatpush1.msra.mxu0 %v798
        %810 = vmatprep.subr.mxu0 0.0
        %811 = vmatpush1.msra.mxu0 %v797
        %812 = vmatprep.subr.mxu0 0.0
        %813 = vmatpush1.msra.mxu0 %v796
        %814 = vmatprep.subr.mxu0 0.0
        %815 = vmatpush1.msra.mxu0 %v795
        %816 = vmatprep.subr.mxu0 0.0
        %817 = vmatpush1.msra.mxu0 %v794
        %818 = vmatprep.subr.mxu0 0.0
        %819 = vmatpush1.msra.mxu0 %v793
        %820 = vmatprep.subr.mxu0 0.0
        %821 = vmatpush1.msra.mxu0 %v792
        %822 = vmatprep.subr.mxu0 0.0
        %823 = vmatpush1.msra.mxu0 %v791
        %824 = vmatprep.subr.mxu0 0.0
        %825 = vmatpush1.msra.mxu0 %v790
        %826 = vmatprep.subr.mxu0 0.0
        %827 = vmatpush1.msra.mxu0 %v789
        %828 = vmatprep.subr.mxu0 0.0
        %829 = vmatpush1.msra.mxu0 %v788
        %830 = vmatprep.subr.mxu0 0.0
        %831 = vmatpush1.msra.mxu0 %v787
        %832 = vmatprep.subr.mxu0 0.0
        %833 = vmatpush1.msra.mxu0 %v786
        %834 = vmatprep.subr.mxu0 0.0
        %835 = vmatpush2.msra.mxu0 0.0
        %836 = vmatprep.subr.mxu0 0.0
        %837 = vmatpush2.msra.mxu0 0.0
        %838 = vmatprep.subr.mxu0 0.0
        %839 = vmatpush2.msra.mxu0 0.0
        %840 = vmatprep.subr.mxu0 0.0
        %841 = vmatpush2.msra.mxu0 0.0
        %842 = vmatprep.subr.mxu0 0.0
        %843 = vmatpush2.msra.mxu0 0.0
        %844 = vmatprep.subr.mxu0 0.0
        %845 = vmatpush2.msra.mxu0 0.0
        %846 = vmatprep.subr.mxu0 0.0
        %847 = vmatpush2.msra.mxu0 0.0
        %848 = vmatprep.subr.mxu0 0.0
        %849 = vmatpush2.msra.mxu0 0.0
        %850 = vmatprep.subr.mxu0 0.0
        %851 = vmatpush2.msra.mxu0 0.0
        %852 = vmatprep.subr.mxu0 0.0
        %853 = vmatpush2.msra.mxu0 0.0
        %854 = vmatprep.subr.mxu0 0.0
        %855 = vmatpush2.msra.mxu0 0.0
        %856 = vmatprep.subr.mxu0 0.0
        %857 = vmatpush2.msra.mxu0 0.0
        %858 = vmatprep.subr.mxu0 0.0
        %859 = vmatpush2.msra.mxu0 0.0
        %860 = vmatprep.subr.mxu0 0.0
        %861 = vmatpush2.msra.mxu0 0.0
        %862 = vmatprep.subr.mxu0 0.0
        %863 = vmatpush2.msra.mxu0 0.0
        %864 = vmatprep.subr.mxu0 0.0
        %865 = vmatpush2.msra.mxu0 0.0
        %866 = vmatprep.mubr.f32.mxu0 0.0
        %867 = vmatmul.mubr.f32.gmra.mxu0 %v612
        %v868 = vpop.f32.mrf.mxu0
        %v869 = vadd.f32 0.0, %v868
        %v870 = vpop.f32.mrf.mxu0
        %871 = vmatprep.mubr.f32.mxu0 0.0
        %872 = vmatmul.mubr.f32.gmra.mxu0 %v617
        %v873 = vpop.f32.mrf.mxu0
        %v874 = vadd.f32 0.0, %v873
        %v875 = vpop.f32.mrf.mxu0
        %876 = vmatprep.mubr.f32.mxu0 0.0
        %877 = vmatmul.mubr.f32.gmra.mxu0 %v622
        %v878 = vpop.f32.mrf.mxu0
        %v879 = vadd.f32 0.0, %v878
        %v880 = vpop.f32.mrf.mxu0
        %881 = vmatprep.mubr.f32.mxu0 0.0
        %882 = vmatmul.mubr.f32.gmra.mxu0 %v627
        %v883 = vpop.f32.mrf.mxu0
        %v884 = vadd.f32 0.0, %v883
        %v885 = vpop.f32.mrf.mxu0
        %886 = vmatprep.mubr.f32.mxu0 0.0
        %887 = vmatmul.mubr.f32.gmra.mxu0 %v632
        %v888 = vpop.f32.mrf.mxu0
        %v889 = vadd.f32 0.0, %v888
        %v890 = vpop.f32.mrf.mxu0
        %891 = vmatprep.mubr.f32.mxu0 0.0
        %892 = vmatmul.mubr.f32.gmra.mxu0 %v637
        %v893 = vpop.f32.mrf.mxu0
        %v894 = vadd.f32 0.0, %v893
        %v895 = vpop.f32.mrf.mxu0
        %896 = vmatprep.mubr.f32.mxu0 0.0
        %897 = vmatmul.mubr.f32.gmra.mxu0 %v642
        %v898 = vpop.f32.mrf.mxu0
        %v899 = vadd.f32 0.0, %v898
        %v900 = vpop.f32.mrf.mxu0
        %901 = vmatprep.mubr.f32.mxu0 0.0
        %902 = vmatmul.mubr.f32.gmra.mxu0 %v647
        %v903 = vpop.f32.mrf.mxu0
        %v904 = vadd.f32 0.0, %v903
        %v905 = vpop.f32.mrf.mxu0
        %906 = vmatprep.mubr.f32.mxu0 0.0
        %907 = vmatmul.mubr.f32.gmra.mxu0 %v652
        %v908 = vpop.f32.mrf.mxu0
        %v909 = vadd.f32 0.0, %v908
        %v910 = vpop.f32.mrf.mxu0
        %911 = vmatprep.mubr.f32.mxu0 0.0
        %912 = vmatmul.mubr.f32.gmra.mxu0 %v657
        %v913 = vpop.f32.mrf.mxu0
        %v914 = vadd.f32 0.0, %v913
        %v915 = vpop.f32.mrf.mxu0
        %916 = vmatprep.mubr.f32.mxu0 0.0
        %917 = vmatmul.mubr.f32.gmra.mxu0 %v662
        %v918 = vpop.f32.mrf.mxu0
        %v919 = vadd.f32 0.0, %v918
        %v920 = vpop.f32.mrf.mxu0
        %921 = vmatprep.mubr.f32.mxu0 0.0
        %922 = vmatmul.mubr.f32.gmra.mxu0 %v667
        %v923 = vpop.f32.mrf.mxu0
        %v924 = vadd.f32 0.0, %v923
        %v925 = vpop.f32.mrf.mxu0
        %926 = vmatprep.mubr.f32.mxu0 0.0
        %927 = vmatmul.mubr.f32.gmra.mxu0 %v672
        %v928 = vpop.f32.mrf.mxu0
        %v929 = vadd.f32 0.0, %v928
        %v930 = vpop.f32.mrf.mxu0
        %931 = vmatprep.mubr.f32.mxu0 0.0
        %932 = vmatmul.mubr.f32.gmra.mxu0 %v677
        %v933 = vpop.f32.mrf.mxu0
        %v934 = vadd.f32 0.0, %v933
        %v935 = vpop.f32.mrf.mxu0
        %936 = vmatprep.mubr.f32.mxu0 0.0
        %937 = vmatmul.mubr.f32.gmra.mxu0 %v682
        %v938 = vpop.f32.mrf.mxu0
        %v939 = vadd.f32 0.0, %v938
        %v940 = vpop.f32.mrf.mxu0
        %941 = vmatprep.mubr.f32.mxu0 0.0
        %942 = vmatmul.mubr.f32.gmra.mxu0 %v687
        %v943 = vpop.f32.mrf.mxu0
        %v944 = vadd.f32 0.0, %v943
        %v945 = vpop.f32.mrf.mxu0
        %946 = vmatprep.mubr.f32.mxu0 0.0
        %947 = vmatmul.mubr.f32.gmra.mxu0 %v692
        %v948 = vpop.f32.mrf.mxu0
        %v949 = vadd.f32 0.0, %v948
        %v950 = vpop.f32.mrf.mxu0
        %951 = vmatprep.mubr.f32.mxu0 0.0
        %952 = vmatmul.mubr.f32.gmra.mxu0 %v697
        %v953 = vpop.f32.mrf.mxu0
        %v954 = vadd.f32 0.0, %v953
        %v955 = vpop.f32.mrf.mxu0
        %956 = vmatprep.mubr.f32.mxu0 0.0
        %957 = vmatmul.mubr.f32.gmra.mxu0 %v702
        %v958 = vpop.f32.mrf.mxu0
        %v959 = vadd.f32 0.0, %v958
        %v960 = vpop.f32.mrf.mxu0
        %961 = vmatprep.mubr.f32.mxu0 0.0
        %962 = vmatmul.mubr.f32.gmra.mxu0 %v707
        %v963 = vpop.f32.mrf.mxu0
        %v964 = vadd.f32 0.0, %v963
        %v965 = vpop.f32.mrf.mxu0
        %966 = vmatprep.mubr.f32.mxu0 0.0
        %967 = vmatmul.mubr.f32.gmra.mxu0 %v712
        %v968 = vpop.f32.mrf.mxu0
        %v969 = vadd.f32 0.0, %v968
        %v970 = vpop.f32.mrf.mxu0
        %971 = vmatprep.mubr.f32.mxu0 0.0
        %972 = vmatmul.mubr.f32.gmra.mxu0 %v717
        %v973 = vpop.f32.mrf.mxu0
        %v974 = vadd.f32 0.0, %v973
        %v975 = vpop.f32.mrf.mxu0
        %976 = vmatprep.mubr.f32.mxu0 0.0
        %977 = vmatmul.mubr.f32.gmra.mxu0 %v722
        %v978 = vpop.f32.mrf.mxu0
        %v979 = vadd.f32 0.0, %v978
        %v980 = vpop.f32.mrf.mxu0
        %981 = vmatprep.mubr.f32.mxu0 0.0
        %982 = vmatmul.mubr.f32.gmra.mxu0 %v727
        %v983 = vpop.f32.mrf.mxu0
        %v984 = vadd.f32 0.0, %v983
        %v985 = vpop.f32.mrf.mxu0
        %986 = vmatprep.mubr.f32.mxu0 0.0
        %987 = vmatmul.mubr.f32.gmra.mxu0 %v732
        %v988 = vpop.f32.mrf.mxu0
        %v989 = vadd.f32 0.0, %v988
        %v990 = vpop.f32.mrf.mxu0
        %991 = vmatprep.mubr.f32.mxu0 0.0
        %992 = vmatmul.mubr.f32.gmra.mxu0 %v737
        %v993 = vpop.f32.mrf.mxu0
        %v994 = vadd.f32 0.0, %v993
        %v995 = vpop.f32.mrf.mxu0
        %996 = vmatprep.mubr.f32.mxu0 0.0
        %997 = vmatmul.mubr.f32.gmra.mxu0 %v742
        %v998 = vpop.f32.mrf.mxu0
        %v999 = vadd.f32 0.0, %v998
        %v1000 = vpop.f32.mrf.mxu0
        %1001 = vmatprep.mubr.f32.mxu0 0.0
        %1002 = vmatmul.mubr.f32.gmra.mxu0 %v747
        %v1003 = vpop.f32.mrf.mxu0
        %v1004 = vadd.f32 0.0, %v1003
        %v1005 = vpop.f32.mrf.mxu0
        %1006 = vmatprep.mubr.f32.mxu0 0.0
        %1007 = vmatmul.mubr.f32.gmra.mxu0 %v752
        %v1008 = vpop.f32.mrf.mxu0
        %v1009 = vadd.f32 0.0, %v1008
        %v1010 = vpop.f32.mrf.mxu0
        %1011 = vmatprep.mubr.f32.mxu0 0.0
        %1012 = vmatmul.mubr.f32.gmra.mxu0 %v757
        %v1013 = vpop.f32.mrf.mxu0
        %v1014 = vadd.f32 0.0, %v1013
        %v1015 = vpop.f32.mrf.mxu0
        %1016 = vmatprep.mubr.f32.mxu0 0.0
        %1017 = vmatmul.mubr.f32.gmra.mxu0 %v762
        %v1018 = vpop.f32.mrf.mxu0
        %v1019 = vadd.f32 0.0, %v1018
        %v1020 = vpop.f32.mrf.mxu0
        %1021 = vmatprep.mubr.f32.mxu0 0.0
        %1022 = vmatmul.mubr.f32.gmra.mxu0 %v767
        %v1023 = vpop.f32.mrf.mxu0
        %v1024 = vadd.f32 0.0, %v1023
        %v1025 = vpop.f32.mrf.mxu0
        %1026 = vdwg.mxu0
        %1027 = vmatprep.subr.mxu0 0.0
        %1028 = vmatpush1.msra.mxu0 %v785
        %1029 = vmatprep.subr.mxu0 0.0
        %1030 = vmatpush1.msra.mxu0 %v784
        %1031 = vmatprep.subr.mxu0 0.0
        %1032 = vmatpush1.msra.mxu0 %v783
        %1033 = vmatprep.subr.mxu0 0.0
        %1034 = vmatpush1.msra.mxu0 %v782
        %1035 = vmatprep.subr.mxu0 0.0
        %1036 = vmatpush1.msra.mxu0 %v781
        %1037 = vmatprep.subr.mxu0 0.0
        %1038 = vmatpush1.msra.mxu0 %v780
        %1039 = vmatprep.subr.mxu0 0.0
        %1040 = vmatpush1.msra.mxu0 %v779
        %1041 = vmatprep.subr.mxu0 0.0
        %1042 = vmatpush1.msra.mxu0 %v778
        %1043 = vmatprep.subr.mxu0 0.0
        %1044 = vmatpush1.msra.mxu0 %v777
        %1045 = vmatprep.subr.mxu0 0.0
        %1046 = vmatpush1.msra.mxu0 %v776
        %1047 = vmatprep.subr.mxu0 0.0
        %1048 = vmatpush1.msra.mxu0 %v775
        %1049 = vmatprep.subr.mxu0 0.0
        %1050 = vmatpush1.msra.mxu0 %v774
        %1051 = vmatprep.subr.mxu0 0.0
        %1052 = vmatpush1.msra.mxu0 %v773
        %1053 = vmatprep.subr.mxu0 0.0
        %1054 = vmatpush1.msra.mxu0 %v772
        %1055 = vmatprep.subr.mxu0 0.0
        %1056 = vmatpush1.msra.mxu0 %v771
        %1057 = vmatprep.subr.mxu0 0.0
        %1058 = vmatpush1.msra.mxu0 %v770
        %1059 = vmatprep.subr.mxu0 0.0
        %1060 = vmatpush2.msra.mxu0 0.0
        %1061 = vmatprep.subr.mxu0 0.0
        %1062 = vmatpush2.msra.mxu0 0.0
        %1063 = vmatprep.subr.mxu0 0.0
        %1064 = vmatpush2.msra.mxu0 0.0
        %1065 = vmatprep.subr.mxu0 0.0
        %1066 = vmatpush2.msra.mxu0 0.0
        %1067 = vmatprep.subr.mxu0 0.0
        %1068 = vmatpush2.msra.mxu0 0.0
        %1069 = vmatprep.subr.mxu0 0.0
        %1070 = vmatpush2.msra.mxu0 0.0
        %1071 = vmatprep.subr.mxu0 0.0
        %1072 = vmatpush2.msra.mxu0 0.0
        %1073 = vmatprep.subr.mxu0 0.0
        %1074 = vmatpush2.msra.mxu0 0.0
        %1075 = vmatprep.subr.mxu0 0.0
        %1076 = vmatpush2.msra.mxu0 0.0
        %1077 = vmatprep.subr.mxu0 0.0
        %1078 = vmatpush2.msra.mxu0 0.0
        %1079 = vmatprep.subr.mxu0 0.0
        %1080 = vmatpush2.msra.mxu0 0.0
        %1081 = vmatprep.subr.mxu0 0.0
        %1082 = vmatpush2.msra.mxu0 0.0
        %1083 = vmatprep.subr.mxu0 0.0
        %1084 = vmatpush2.msra.mxu0 0.0
        %1085 = vmatprep.subr.mxu0 0.0
        %1086 = vmatpush2.msra.mxu0 0.0
        %1087 = vmatprep.subr.mxu0 0.0
        %1088 = vmatpush2.msra.mxu0 0.0
        %1089 = vmatprep.subr.mxu0 0.0
        %1090 = vmatpush2.msra.mxu0 0.0
        %1091 = vmatprep.mubr.f32.mxu0 0.0
        %1092 = vmatmul.mubr.f32.gmra.mxu0 %v410
        %v1093 = vpop.f32.mrf.mxu0
        %v1094 = vadd.f32 %v869, %v1093
        %v1095 = vpop.f32.mrf.mxu0
        %1096 = vmatprep.mubr.f32.mxu0 0.0
        %1097 = vmatmul.mubr.f32.gmra.mxu0 %v411
        %v1098 = vpop.f32.mrf.mxu0
        %v1099 = vadd.f32 %v874, %v1098
        %v1100 = vpop.f32.mrf.mxu0
        %1101 = vmatprep.mubr.f32.mxu0 0.0
        %1102 = vmatmul.mubr.f32.gmra.mxu0 %v412
        %v1103 = vpop.f32.mrf.mxu0
        %v1104 = vadd.f32 %v879, %v1103
        %v1105 = vpop.f32.mrf.mxu0
        %1106 = vmatprep.mubr.f32.mxu0 0.0
        %1107 = vmatmul.mubr.f32.gmra.mxu0 %v413
        %v1108 = vpop.f32.mrf.mxu0
        %v1109 = vadd.f32 %v884, %v1108
        %v1110 = vpop.f32.mrf.mxu0
        %1111 = vmatprep.mubr.f32.mxu0 0.0
        %1112 = vmatmul.mubr.f32.gmra.mxu0 %v414
        %v1113 = vpop.f32.mrf.mxu0
        %v1114 = vadd.f32 %v889, %v1113
        %v1115 = vpop.f32.mrf.mxu0
        %1116 = vmatprep.mubr.f32.mxu0 0.0
        %1117 = vmatmul.mubr.f32.gmra.mxu0 %v415
        %v1118 = vpop.f32.mrf.mxu0
        %v1119 = vadd.f32 %v894, %v1118
        %v1120 = vpop.f32.mrf.mxu0
        %1121 = vmatprep.mubr.f32.mxu0 0.0
        %1122 = vmatmul.mubr.f32.gmra.mxu0 %v416
        %v1123 = vpop.f32.mrf.mxu0
        %v1124 = vadd.f32 %v899, %v1123
        %v1125 = vpop.f32.mrf.mxu0
        %1126 = vmatprep.mubr.f32.mxu0 0.0
        %1127 = vmatmul.mubr.f32.gmra.mxu0 %v417
        %v1128 = vpop.f32.mrf.mxu0
        %v1129 = vadd.f32 %v904, %v1128
        %v1130 = vpop.f32.mrf.mxu0
        %1131 = vmatprep.mubr.f32.mxu0 0.0
        %1132 = vmatmul.mubr.f32.gmra.mxu0 %v418
        %v1133 = vpop.f32.mrf.mxu0
        %v1134 = vadd.f32 %v909, %v1133
        %v1135 = vpop.f32.mrf.mxu0
        %1136 = vmatprep.mubr.f32.mxu0 0.0
        %1137 = vmatmul.mubr.f32.gmra.mxu0 %v419
        %v1138 = vpop.f32.mrf.mxu0
        %v1139 = vadd.f32 %v914, %v1138
        %v1140 = vpop.f32.mrf.mxu0
        %1141 = vmatprep.mubr.f32.mxu0 0.0
        %1142 = vmatmul.mubr.f32.gmra.mxu0 %v420
        %v1143 = vpop.f32.mrf.mxu0
        %v1144 = vadd.f32 %v919, %v1143
        %v1145 = vpop.f32.mrf.mxu0
        %1146 = vmatprep.mubr.f32.mxu0 0.0
        %1147 = vmatmul.mubr.f32.gmra.mxu0 %v421
        %v1148 = vpop.f32.mrf.mxu0
        %v1149 = vadd.f32 %v924, %v1148
        %v1150 = vpop.f32.mrf.mxu0
        %1151 = vmatprep.mubr.f32.mxu0 0.0
        %1152 = vmatmul.mubr.f32.gmra.mxu0 %v422
        %v1153 = vpop.f32.mrf.mxu0
        %v1154 = vadd.f32 %v929, %v1153
        %v1155 = vpop.f32.mrf.mxu0
        %1156 = vmatprep.mubr.f32.mxu0 0.0
        %1157 = vmatmul.mubr.f32.gmra.mxu0 %v423
        %v1158 = vpop.f32.mrf.mxu0
        %v1159 = vadd.f32 %v934, %v1158
        %v1160 = vpop.f32.mrf.mxu0
        %1161 = vmatprep.mubr.f32.mxu0 0.0
        %1162 = vmatmul.mubr.f32.gmra.mxu0 %v424
        %v1163 = vpop.f32.mrf.mxu0
        %v1164 = vadd.f32 %v939, %v1163
        %v1165 = vpop.f32.mrf.mxu0
        %1166 = vmatprep.mubr.f32.mxu0 0.0
        %1167 = vmatmul.mubr.f32.gmra.mxu0 %v425
        %v1168 = vpop.f32.mrf.mxu0
        %v1169 = vadd.f32 %v944, %v1168
        %v1170 = vpop.f32.mrf.mxu0
        %1171 = vmatprep.mubr.f32.mxu0 0.0
        %1172 = vmatmul.mubr.f32.gmra.mxu0 %v426
        %v1173 = vpop.f32.mrf.mxu0
        %v1174 = vadd.f32 %v949, %v1173
        %v1175 = vpop.f32.mrf.mxu0
        %1176 = vmatprep.mubr.f32.mxu0 0.0
        %1177 = vmatmul.mubr.f32.gmra.mxu0 %v427
        %v1178 = vpop.f32.mrf.mxu0
        %v1179 = vadd.f32 %v954, %v1178
        %v1180 = vpop.f32.mrf.mxu0
        %1181 = vmatprep.mubr.f32.mxu0 0.0
        %1182 = vmatmul.mubr.f32.gmra.mxu0 %v428
        %v1183 = vpop.f32.mrf.mxu0
        %v1184 = vadd.f32 %v959, %v1183
        %v1185 = vpop.f32.mrf.mxu0
        %1186 = vmatprep.mubr.f32.mxu0 0.0
        %1187 = vmatmul.mubr.f32.gmra.mxu0 %v429
        %v1188 = vpop.f32.mrf.mxu0
        %v1189 = vadd.f32 %v964, %v1188
        %v1190 = vpop.f32.mrf.mxu0
        %1191 = vmatprep.mubr.f32.mxu0 0.0
        %1192 = vmatmul.mubr.f32.gmra.mxu0 %v430
        %v1193 = vpop.f32.mrf.mxu0
        %v1194 = vadd.f32 %v969, %v1193
        %v1195 = vpop.f32.mrf.mxu0
        %1196 = vmatprep.mubr.f32.mxu0 0.0
        %1197 = vmatmul.mubr.f32.gmra.mxu0 %v431
        %v1198 = vpop.f32.mrf.mxu0
        %v1199 = vadd.f32 %v974, %v1198
        %v1200 = vpop.f32.mrf.mxu0
        %1201 = vmatprep.mubr.f32.mxu0 0.0
        %1202 = vmatmul.mubr.f32.gmra.mxu0 %v432
        %v1203 = vpop.f32.mrf.mxu0
        %v1204 = vadd.f32 %v979, %v1203
        %v1205 = vpop.f32.mrf.mxu0
        %1206 = vmatprep.mubr.f32.mxu0 0.0
        %1207 = vmatmul.mubr.f32.gmra.mxu0 %v433
        %v1208 = vpop.f32.mrf.mxu0
        %v1209 = vadd.f32 %v984, %v1208
        %v1210 = vpop.f32.mrf.mxu0
        %1211 = vmatprep.mubr.f32.mxu0 0.0
        %1212 = vmatmul.mubr.f32.gmra.mxu0 %v434
        %v1213 = vpop.f32.mrf.mxu0
        %v1214 = vadd.f32 %v989, %v1213
        %v1215 = vpop.f32.mrf.mxu0
        %1216 = vmatprep.mubr.f32.mxu0 0.0
        %1217 = vmatmul.mubr.f32.gmra.mxu0 %v435
        %v1218 = vpop.f32.mrf.mxu0
        %v1219 = vadd.f32 %v994, %v1218
        %v1220 = vpop.f32.mrf.mxu0
        %1221 = vmatprep.mubr.f32.mxu0 0.0
        %1222 = vmatmul.mubr.f32.gmra.mxu0 %v436
        %v1223 = vpop.f32.mrf.mxu0
        %v1224 = vadd.f32 %v999, %v1223
        %v1225 = vpop.f32.mrf.mxu0
        %1226 = vmatprep.mubr.f32.mxu0 0.0
        %1227 = vmatmul.mubr.f32.gmra.mxu0 %v437
        %v1228 = vpop.f32.mrf.mxu0
        %v1229 = vadd.f32 %v1004, %v1228
        %v1230 = vpop.f32.mrf.mxu0
        %1231 = vmatprep.mubr.f32.mxu0 0.0
        %1232 = vmatmul.mubr.f32.gmra.mxu0 %v438
        %v1233 = vpop.f32.mrf.mxu0
        %v1234 = vadd.f32 %v1009, %v1233
        %v1235 = vpop.f32.mrf.mxu0
        %1236 = vmatprep.mubr.f32.mxu0 0.0
        %1237 = vmatmul.mubr.f32.gmra.mxu0 %v439
        %v1238 = vpop.f32.mrf.mxu0
        %v1239 = vadd.f32 %v1014, %v1238
        %v1240 = vpop.f32.mrf.mxu0
        %1241 = vmatprep.mubr.f32.mxu0 0.0
        %1242 = vmatmul.mubr.f32.gmra.mxu0 %v440
        %v1243 = vpop.f32.mrf.mxu0
        %v1244 = vadd.f32 %v1019, %v1243
        %v1245 = vpop.f32.mrf.mxu0
        %1246 = vmatprep.mubr.f32.mxu0 0.0
        %1247 = vmatmul.mubr.f32.gmra.mxu0 %v441
        %v1248 = vpop.f32.mrf.mxu0
        %v1249 = vadd.f32 %v1024, %v1248
        %v1250 = vpop.f32.mrf.mxu0
        %1251 = vdwg.mxu0
        %v1252 = vld [vmem:[%s6] sm:$0x1]
        %v1254 = vlaneseq
        %v1255 = vshrl.u32 %v1254, 7
        %v1256 = vsub.s32 0, %v1255
        %v1257 = vrot.slane %v1252, %v1256
        %v1259 = vadd.f32 %v1094, %v1257
        %v1260 = vadd.f32 %v1099, %v1257
        %v1261 = vadd.f32 %v1104, %v1257
        %v1262 = vadd.f32 %v1109, %v1257
        %v1263 = vadd.f32 %v1114, %v1257
        %v1264 = vadd.f32 %v1119, %v1257
        %v1265 = vadd.f32 %v1124, %v1257
        %v1266 = vadd.f32 %v1129, %v1257
        %v1267 = vadd.f32 %v1134, %v1257
        %v1268 = vadd.f32 %v1139, %v1257
        %v1269 = vadd.f32 %v1144, %v1257
        %v1270 = vadd.f32 %v1149, %v1257
        %v1271 = vadd.f32 %v1154, %v1257
        %v1272 = vadd.f32 %v1159, %v1257
        %v1273 = vadd.f32 %v1164, %v1257
        %v1274 = vadd.f32 %v1169, %v1257
        %v1275 = vadd.f32 %v1174, %v1257
        %v1276 = vadd.f32 %v1179, %v1257
        %v1277 = vadd.f32 %v1184, %v1257
        %v1278 = vadd.f32 %v1189, %v1257
        %v1279 = vadd.f32 %v1194, %v1257
        %v1280 = vadd.f32 %v1199, %v1257
        %v1281 = vadd.f32 %v1204, %v1257
        %v1282 = vadd.f32 %v1209, %v1257
        %v1283 = vadd.f32 %v1214, %v1257
        %v1284 = vadd.f32 %v1219, %v1257
        %v1285 = vadd.f32 %v1224, %v1257
        %v1286 = vadd.f32 %v1229, %v1257
        %v1287 = vadd.f32 %v1234, %v1257
        %v1288 = vadd.f32 %v1239, %v1257
        %v1289 = vadd.f32 %v1244, %v1257
        %v1290 = vadd.f32 %v1249, %v1257
        %v1291 = vxor.u32 %v1259, 2147483648
        %v1292 = vxor.u32 %v1260, 2147483648
        %v1293 = vxor.u32 %v1261, 2147483648
        %v1294 = vxor.u32 %v1262, 2147483648
        %v1295 = vxor.u32 %v1263, 2147483648
        %v1296 = vxor.u32 %v1264, 2147483648
        %v1297 = vxor.u32 %v1265, 2147483648
        %v1298 = vxor.u32 %v1266, 2147483648
        %v1299 = vxor.u32 %v1267, 2147483648
        %v1300 = vxor.u32 %v1268, 2147483648
        %v1301 = vxor.u32 %v1269, 2147483648
        %v1302 = vxor.u32 %v1270, 2147483648
        %v1303 = vxor.u32 %v1271, 2147483648
        %v1304 = vxor.u32 %v1272, 2147483648
        %v1305 = vxor.u32 %v1273, 2147483648
        %v1306 = vxor.u32 %v1274, 2147483648
        %v1307 = vxor.u32 %v1275, 2147483648
        %v1308 = vxor.u32 %v1276, 2147483648
        %v1309 = vxor.u32 %v1277, 2147483648
        %v1310 = vxor.u32 %v1278, 2147483648
        %v1311 = vxor.u32 %v1279, 2147483648
        %v1312 = vxor.u32 %v1280, 2147483648
        %v1313 = vxor.u32 %v1281, 2147483648
        %v1314 = vxor.u32 %v1282, 2147483648
        %v1315 = vxor.u32 %v1283, 2147483648
        %v1316 = vxor.u32 %v1284, 2147483648
        %v1317 = vxor.u32 %v1285, 2147483648
        %v1318 = vxor.u32 %v1286, 2147483648
        %v1319 = vxor.u32 %v1287, 2147483648
        %v1320 = vxor.u32 %v1288, 2147483648
        %v1321 = vxor.u32 %v1289, 2147483648
        %v1322 = vxor.u32 %v1290, 2147483648
        %v1323 = vmul.f32 %v1291, 1.442695
        %v1324 = vpow.pop %v1323
        %v1325 = vmul.f32 %v1292, 1.442695
        %v1326 = vpow.pop %v1325
        %v1327 = vmul.f32 %v1293, 1.442695
        %v1328 = vpow.pop %v1327
        %v1329 = vmul.f32 %v1294, 1.442695
        %v1330 = vpow.pop %v1329
        %v1331 = vmul.f32 %v1295, 1.442695
        %v1332 = vpow.pop %v1331
        %v1333 = vmul.f32 %v1296, 1.442695
        %v1334 = vpow.pop %v1333
        %v1335 = vmul.f32 %v1297, 1.442695
        %v1336 = vpow.pop %v1335
        %v1337 = vmul.f32 %v1298, 1.442695
        %v1338 = vpow.pop %v1337
        %v1339 = vmul.f32 %v1299, 1.442695
        %v1340 = vpow.pop %v1339
        %v1341 = vmul.f32 %v1300, 1.442695
        %v1342 = vpow.pop %v1341
        %v1343 = vmul.f32 %v1301, 1.442695
        %v1344 = vpow.pop %v1343
        %v1345 = vmul.f32 %v1302, 1.442695
        %v1346 = vpow.pop %v1345
        %v1347 = vmul.f32 %v1303, 1.442695
        %v1348 = vpow.pop %v1347
        %v1349 = vmul.f32 %v1304, 1.442695
        %v1350 = vpow.pop %v1349
        %v1351 = vmul.f32 %v1305, 1.442695
        %v1352 = vpow.pop %v1351
        %v1353 = vmul.f32 %v1306, 1.442695
        %v1354 = vpow.pop %v1353
        %v1355 = vmul.f32 %v1307, 1.442695
        %v1356 = vpow.pop %v1355
        %v1357 = vmul.f32 %v1308, 1.442695
        %v1358 = vpow.pop %v1357
        %v1359 = vmul.f32 %v1309, 1.442695
        %v1360 = vpow.pop %v1359
        %v1361 = vmul.f32 %v1310, 1.442695
        %v1362 = vpow.pop %v1361
        %v1363 = vmul.f32 %v1311, 1.442695
        %v1364 = vpow.pop %v1363
        %v1365 = vmul.f32 %v1312, 1.442695
        %v1366 = vpow.pop %v1365
        %v1367 = vmul.f32 %v1313, 1.442695
        %v1368 = vpow.pop %v1367
        %v1369 = vmul.f32 %v1314, 1.442695
        %v1370 = vpow.pop %v1369
        %v1371 = vmul.f32 %v1315, 1.442695
        %v1372 = vpow.pop %v1371
        %v1373 = vmul.f32 %v1316, 1.442695
        %v1374 = vpow.pop %v1373
        %v1375 = vmul.f32 %v1317, 1.442695
        %v1376 = vpow.pop %v1375
        %v1377 = vmul.f32 %v1318, 1.442695
        %v1378 = vpow.pop %v1377
        %v1379 = vmul.f32 %v1319, 1.442695
        %v1380 = vpow.pop %v1379
        %v1381 = vmul.f32 %v1320, 1.442695
        %v1382 = vpow.pop %v1381
        %v1383 = vmul.f32 %v1321, 1.442695
        %v1384 = vpow.pop %v1383
        %v1385 = vmul.f32 %v1322, 1.442695
        %v1386 = vpow.pop %v1385
        %v1387 = vadd.f32 %v1324, 1.0
        %v1388 = vadd.f32 %v1326, 1.0
        %v1389 = vadd.f32 %v1328, 1.0
        %v1390 = vadd.f32 %v1330, 1.0
        %v1391 = vadd.f32 %v1332, 1.0
        %v1392 = vadd.f32 %v1334, 1.0
        %v1393 = vadd.f32 %v1336, 1.0
        %v1394 = vadd.f32 %v1338, 1.0
        %v1395 = vadd.f32 %v1340, 1.0
        %v1396 = vadd.f32 %v1342, 1.0
        %v1397 = vadd.f32 %v1344, 1.0
        %v1398 = vadd.f32 %v1346, 1.0
        %v1399 = vadd.f32 %v1348, 1.0
        %v1400 = vadd.f32 %v1350, 1.0
        %v1401 = vadd.f32 %v1352, 1.0
        %v1402 = vadd.f32 %v1354, 1.0
        %v1403 = vadd.f32 %v1356, 1.0
        %v1404 = vadd.f32 %v1358, 1.0
        %v1405 = vadd.f32 %v1360, 1.0
        %v1406 = vadd.f32 %v1362, 1.0
        %v1407 = vadd.f32 %v1364, 1.0
        %v1408 = vadd.f32 %v1366, 1.0
        %v1409 = vadd.f32 %v1368, 1.0
        %v1410 = vadd.f32 %v1370, 1.0
        %v1411 = vadd.f32 %v1372, 1.0
        %v1412 = vadd.f32 %v1374, 1.0
        %v1413 = vadd.f32 %v1376, 1.0
        %v1414 = vadd.f32 %v1378, 1.0
        %v1415 = vadd.f32 %v1380, 1.0
        %v1416 = vadd.f32 %v1382, 1.0
        %v1417 = vadd.f32 %v1384, 1.0
        %v1418 = vadd.f32 %v1386, 1.0
        %v1419 = vrcp.pop %v1387
        %v1420 = vmul.f32 1.0, %v1419
        %v1421 = vrcp.pop %v1388
        %v1422 = vmul.f32 1.0, %v1421
        %v1423 = vrcp.pop %v1389
        %v1424 = vmul.f32 1.0, %v1423
        %v1425 = vrcp.pop %v1390
        %v1426 = vmul.f32 1.0, %v1425
        %v1427 = vrcp.pop %v1391
        %v1428 = vmul.f32 1.0, %v1427
        %v1429 = vrcp.pop %v1392
        %v1430 = vmul.f32 1.0, %v1429
        %v1431 = vrcp.pop %v1393
        %v1432 = vmul.f32 1.0, %v1431
        %v1433 = vrcp.pop %v1394
        %v1434 = vmul.f32 1.0, %v1433
        %v1435 = vrcp.pop %v1395
        %v1436 = vmul.f32 1.0, %v1435
        %v1437 = vrcp.pop %v1396
        %v1438 = vmul.f32 1.0, %v1437
        %v1439 = vrcp.pop %v1397
        %v1440 = vmul.f32 1.0, %v1439
        %v1441 = vrcp.pop %v1398
        %v1442 = vmul.f32 1.0, %v1441
        %v1443 = vrcp.pop %v1399
        %v1444 = vmul.f32 1.0, %v1443
        %v1445 = vrcp.pop %v1400
        %v1446 = vmul.f32 1.0, %v1445
        %v1447 = vrcp.pop %v1401
        %v1448 = vmul.f32 1.0, %v1447
        %v1449 = vrcp.pop %v1402
        %v1450 = vmul.f32 1.0, %v1449
        %v1451 = vrcp.pop %v1403
        %v1452 = vmul.f32 1.0, %v1451
        %v1453 = vrcp.pop %v1404
        %v1454 = vmul.f32 1.0, %v1453
        %v1455 = vrcp.pop %v1405
        %v1456 = vmul.f32 1.0, %v1455
        %v1457 = vrcp.pop %v1406
        %v1458 = vmul.f32 1.0, %v1457
        %v1459 = vrcp.pop %v1407
        %v1460 = vmul.f32 1.0, %v1459
        %v1461 = vrcp.pop %v1408
        %v1462 = vmul.f32 1.0, %v1461
        %v1463 = vrcp.pop %v1409
        %v1464 = vmul.f32 1.0, %v1463
        %v1465 = vrcp.pop %v1410
        %v1466 = vmul.f32 1.0, %v1465
        %v1467 = vrcp.pop %v1411
        %v1468 = vmul.f32 1.0, %v1467
        %v1469 = vrcp.pop %v1412
        %v1470 = vmul.f32 1.0, %v1469
        %v1471 = vrcp.pop %v1413
        %v1472 = vmul.f32 1.0, %v1471
        %v1473 = vrcp.pop %v1414
        %v1474 = vmul.f32 1.0, %v1473
        %v1475 = vrcp.pop %v1415
        %v1476 = vmul.f32 1.0, %v1475
        %v1477 = vrcp.pop %v1416
        %v1478 = vmul.f32 1.0, %v1477
        %v1479 = vrcp.pop %v1417
        %v1480 = vmul.f32 1.0, %v1479
        %v1481 = vrcp.pop %v1418
        %v1482 = vmul.f32 1.0, %v1481
        %v1483 = vmul.f32 %v1420, %v612
        %v1484 = vmul.f32 %v1422, %v617
        %v1485 = vmul.f32 %v1424, %v622
        %v1486 = vmul.f32 %v1426, %v627
        %v1487 = vmul.f32 %v1428, %v632
        %v1488 = vmul.f32 %v1430, %v637
        %v1489 = vmul.f32 %v1432, %v642
        %v1490 = vmul.f32 %v1434, %v647
        %v1491 = vmul.f32 %v1436, %v652
        %v1492 = vmul.f32 %v1438, %v657
        %v1493 = vmul.f32 %v1440, %v662
        %v1494 = vmul.f32 %v1442, %v667
        %v1495 = vmul.f32 %v1444, %v672
        %v1496 = vmul.f32 %v1446, %v677
        %v1497 = vmul.f32 %v1448, %v682
        %v1498 = vmul.f32 %v1450, %v687
        %v1499 = vmul.f32 %v1452, %v692
        %v1500 = vmul.f32 %v1454, %v697
        %v1501 = vmul.f32 %v1456, %v702
        %v1502 = vmul.f32 %v1458, %v707
        %v1503 = vmul.f32 %v1460, %v712
        %v1504 = vmul.f32 %v1462, %v717
        %v1505 = vmul.f32 %v1464, %v722
        %v1506 = vmul.f32 %v1466, %v727
        %v1507 = vmul.f32 %v1468, %v732
        %v1508 = vmul.f32 %v1470, %v737
        %v1509 = vmul.f32 %v1472, %v742
        %v1510 = vmul.f32 %v1474, %v747
        %v1511 = vmul.f32 %v1476, %v752
        %v1512 = vmul.f32 %v1478, %v757
        %v1513 = vmul.f32 %v1480, %v762
        %v1514 = vmul.f32 %v1482, %v767
        %v1515 = vadd.f32 %v410, %v1483
        %v1516 = vadd.f32 %v411, %v1484
        %v1517 = vadd.f32 %v412, %v1485
        %v1518 = vadd.f32 %v413, %v1486
        %v1519 = vadd.f32 %v414, %v1487
        %v1520 = vadd.f32 %v415, %v1488
        %v1521 = vadd.f32 %v416, %v1489
        %v1522 = vadd.f32 %v417, %v1490
        %v1523 = vadd.f32 %v418, %v1491
        %v1524 = vadd.f32 %v419, %v1492
        %v1525 = vadd.f32 %v420, %v1493
        %v1526 = vadd.f32 %v421, %v1494
        %v1527 = vadd.f32 %v422, %v1495
        %v1528 = vadd.f32 %v423, %v1496
        %v1529 = vadd.f32 %v424, %v1497
        %v1530 = vadd.f32 %v425, %v1498
        %v1531 = vadd.f32 %v426, %v1499
        %v1532 = vadd.f32 %v427, %v1500
        %v1533 = vadd.f32 %v428, %v1501
        %v1534 = vadd.f32 %v429, %v1502
        %v1535 = vadd.f32 %v430, %v1503
        %v1536 = vadd.f32 %v431, %v1504
        %v1537 = vadd.f32 %v432, %v1505
        %v1538 = vadd.f32 %v433, %v1506
        %v1539 = vadd.f32 %v434, %v1507
        %v1540 = vadd.f32 %v435, %v1508
        %v1541 = vadd.f32 %v436, %v1509
        %v1542 = vadd.f32 %v437, %v1510
        %v1543 = vadd.f32 %v438, %v1511
        %v1544 = vadd.f32 %v439, %v1512
        %v1545 = vadd.f32 %v440, %v1513
        %v1546 = vadd.f32 %v441, %v1514
        %1547 = vst [vmem:[%s393] sm:$0xff] %v1515
        %1548 = vst [vmem:[%s393 + $0x8] sm:$0xff] %v1516
        %1549 = vst [vmem:[%s393 + $0x10] sm:$0xff] %v1517
        %1550 = vst [vmem:[%s393 + $0x18] sm:$0xff] %v1518
        %1551 = vst [vmem:[%s393 + $0x20] sm:$0xff] %v1519
        %1552 = vst [vmem:[%s393 + $0x28] sm:$0xff] %v1520
        %1553 = vst [vmem:[%s393 + $0x30] sm:$0xff] %v1521
        %1554 = vst [vmem:[%s393 + $0x38] sm:$0xff] %v1522
        %1555 = vst [vmem:[%s393 + $0x40] sm:$0xff] %v1523
        %1556 = vst [vmem:[%s393 + $0x48] sm:$0xff] %v1524
        %1557 = vst [vmem:[%s393 + $0x50] sm:$0xff] %v1525
        %1558 = vst [vmem:[%s393 + $0x58] sm:$0xff] %v1526
        %1559 = vst [vmem:[%s393 + $0x60] sm:$0xff] %v1527
        %1560 = vst [vmem:[%s393 + $0x68] sm:$0xff] %v1528
        %1561 = vst [vmem:[%s393 + $0x70] sm:$0xff] %v1529
        %1562 = vst [vmem:[%s393 + $0x78] sm:$0xff] %v1530
        %1563 = vst [vmem:[%s393 + $0x80] sm:$0xff] %v1531
        %1564 = vst [vmem:[%s393 + $0x88] sm:$0xff] %v1532
        %1565 = vst [vmem:[%s393 + $0x90] sm:$0xff] %v1533
        %1566 = vst [vmem:[%s393 + $0x98] sm:$0xff] %v1534
        %1567 = vst [vmem:[%s393 + $0xa0] sm:$0xff] %v1535
        %1568 = vst [vmem:[%s393 + $0xa8] sm:$0xff] %v1536
        %1569 = vst [vmem:[%s393 + $0xb0] sm:$0xff] %v1537
        %1570 = vst [vmem:[%s393 + $0xb8] sm:$0xff] %v1538
        %1571 = vst [vmem:[%s393 + $0xc0] sm:$0xff] %v1539
        %1572 = vst [vmem:[%s393 + $0xc8] sm:$0xff] %v1540
        %1573 = vst [vmem:[%s393 + $0xd0] sm:$0xff] %v1541
        %1574 = vst [vmem:[%s393 + $0xd8] sm:$0xff] %v1542
        %1575 = vst [vmem:[%s393 + $0xe0] sm:$0xff] %v1543
        %1576 = vst [vmem:[%s393 + $0xe8] sm:$0xff] %v1544
        %1577 = vst [vmem:[%s393 + $0xf0] sm:$0xff] %v1545
        %1578 = vst [vmem:[%s393 + $0xf8] sm:$0xff] %v1546
        %s1579 = sand.u32 %s193, 1
        %s1580 = scalar_lea.sflag [#allocation4], %s1579
        %s1581 = sand.u32 %s193, 1
        %s1582 = smul.addr %s1581, 256
        %s1583 = scalar_lea.vmem [#allocation11], %s1582
        // Predicated region
        $region69: #{gate_forward.1} parent=47 // pred_check
          %p1584 = pneg %p203
        $region70: #{gate_forward.1} parent=47 // pred_check_branch
          %1586 = sbr.rel (%p1584) target = $region72
        $region71: #{gate_forward.1} parent=47 // pred_region
          %s1587 = smul.u32 32, %s28
          %s1588 = ssub.s32 125, %s1587
          %p1589 = scmp.lt.s32.totalorder %s1588, 32
          %s1590 = scalar_select %p1589, %s1588, 32
          %s1591 = smul.u32 128, %s1590
          %s1593 = ssub.s32 4096, %s1591
          %1594 = vsyncadd %s1580, %s1593
          %p1595 = scmp.ne.s32.totalorder 0, %s1591
          %s1596 = smul.addr %s1587, 128
          %s1597 = scalar_lea.hbm %s7, %s1596
          %s1598 = smul.u32 8, %s1590
          %s1599 = sshll.u32 %s1583, 4
          %s1600 = int_to_ptr.vmem [resolvable:$true] %s1599
          %s1601 = sshll.u32 %s1598, 4
          %1605 = dma.vmem_to_hbm [thread:$0]  (%p1595), %s1600, %s1601, %s1597, %s1580, 128, 128, 8
        $region72: #{gate_forward.1} parent=47 // pred_fallthru
          _
      $region48: #{gate_forward.1} parent=5 // pred_fallthru
        _
      %p1606 = scmp.le.s32.totalorder 2, %s23
      // Predicated region
      $region73: #{gate_forward.1} parent=5 // pred_check
        %p1607 = pneg %p1606
      $region74: #{gate_forward.1} parent=5 // pred_check_branch
        %1609 = sbr.rel (%p1607) target = $region76
      $region75: #{gate_forward.1} parent=5 // pred_region
        %s1610 = ssub.s32 %s23, 2
        // Predicated region
        $region77: #{gate_forward.1} parent=75 // pred_check
          %p1611 = pneg %p209
        $region78: #{gate_forward.1} parent=75 // pred_check_branch
          %1613 = sbr.rel (%p1611) target = $region80
        $region79: #{gate_forward.1} parent=75 // pred_region
          %s1614 = sand.u32 %s194, 1
          %s1615 = scalar_lea.sflag [#allocation4], %s1614
          %s1616 = sand.u32 %s194, 1
          %s1617 = smul.addr %s1616, 256
          %s1618 = scalar_lea.vmem [#allocation11], %s1617
          %1619 = dma.done %s1615, 4096
        $region80: #{gate_forward.1} parent=75 // pred_fallthru
          _
      $region76: #{gate_forward.1} parent=5 // pred_fallthru
        _
    $region6: #{gate_forward.1} parent=1 // loop_footer
      %s27 = sadd.s32 1, %s23
    $region7: #{gate_forward.1} parent=1 // loop_footer_branch
      %22 = sbr.rel target = $region3
    $region8: #{gate_forward.1} parent=1 // loop_exit
      _
    %1620 = vsyncpa [#allocation3], 1
    %s1621 = scalar_lea.sflag [#allocation3], 1
    %1622 = vsyncpa %s1621, 1
    %1623 = vsyncpa [#allocation6], 1
    %s1624 = scalar_lea.sflag [#allocation6], 1
    %1625 = vsyncpa %s1624, 1
    %1626 = vsyncpa [#allocation9], 1
    %1627 = vsyncpa [#allocation4], 1
    %s1628 = scalar_lea.sflag [#allocation4], 1
    %1629 = vsyncpa %s1628, 1

</llo_original>
